<compile_context>
chip_gen: v5e
topology: v5e:2x2
jax: 0.10.0
libtpu: 0.0.40
codegen_flags: <defaults>
</compile_context>

<pallas_src>
import functools

import jax
import jax.numpy as jnp
import numpy as np
from jax.experimental import pallas as pl
from jax.experimental.pallas import tpu as pltpu


def _round_up(x: int, m: int) -> int:
    return ((x + m - 1) // m) * m


# ----------------------------------------------------------------------------
# Kernel: o = relu(x @ w + b) for one (tm, tn) output tile.
#   x_ref : (tm, K)   input rows (full K per block)
#   w_ref : (K, tn)   weight slab, lane-dense along out_features
#   b_ref : (1, tn)   bias slice
#   o_ref : (tm, tn)  output tile
# ----------------------------------------------------------------------------
def linear_relu_kernel(x_ref, w_ref, b_ref, o_ref):
    acc = jnp.dot(
        x_ref[...],
        w_ref[...],
        preferred_element_type=jnp.float32,
        precision=jax.lax.Precision.HIGHEST,
    )
    o_ref[...] = jnp.maximum(acc + b_ref[...], 0.0).astype(o_ref.dtype)


# ----------------------------------------------------------------------------
# One-time parameter prep (NOT on the per-call path):
#   PyTorch weight (N, K) -> lane-dense (K, N_pad) f32, bias -> (1, N_pad).
# ----------------------------------------------------------------------------
def prepare_linear_params(weight, bias):
    N, K = weight.shape
    N_pad = _round_up(N, 128)
    w_p = jnp.pad(weight.T, ((0, 0), (0, N_pad - N)))          # (K, N_pad)
    b_p = jnp.pad(bias.reshape(1, N), ((0, 0), (0, N_pad - N)))  # (1, N_pad)
    return jax.device_put(w_p), jax.device_put(b_p)


# ----------------------------------------------------------------------------
# Forward: relu(x @ weight.T + bias), with pre-prepared (K, N_pad) weights.
# ----------------------------------------------------------------------------
@functools.partial(jax.jit, static_argnames=("n_out",))
def linear_relu(x, w_p, b_p, *, n_out):
    M, K = x.shape
    K_w, N_pad = w_p.shape
    assert K == K_w, "input feature dim mismatch"

    # Pad the (tiny) activation rows up to a sublane multiple of 8.
    M_pad = max(8, _round_up(M, 8))
    tm = min(M_pad, 128)
    M_pad = _round_up(M_pad, tm)
    x_p = jnp.pad(x, ((0, M_pad - M), (0, 0)))

    # N tile: a divisor of N_pad. Split into 2 blocks only when both halves
    # stay 128-lane aligned (gives v7x's two TCs one block each; costs one
    # extra ~0.35us grid step on single-TC chips, which is negligible).
    tn = N_pad // 2 if (N_pad >= 256 and N_pad % 256 == 0) else N_pad

    grid = (M_pad // tm, N_pad // tn)

    out = pl.pallas_call(
        linear_relu_kernel,
        out_shape=jax.ShapeDtypeStruct((M_pad, N_pad), jnp.float32),
        grid_spec=pltpu.PrefetchScalarGridSpec(
            num_scalar_prefetch=0,
            grid=grid,
            in_specs=[
                pl.BlockSpec((tm, K), lambda i, j: (i, 0)),   # x rows, full K
                pl.BlockSpec((K, tn), lambda i, j: (0, j)),   # weight slab
                pl.BlockSpec((1, tn), lambda i, j: (0, j)),   # bias slice
            ],
            out_specs=pl.BlockSpec((tm, tn), lambda i, j: (i, j)),
        ),
        compiler_params=pltpu.CompilerParams(
            # Both grid axes are independent -> shard across TCs where possible.
            dimension_semantics=("parallel", "parallel"),
        ),
    )(x_p, w_p, b_p)

    return out[:M, :n_out]


# ----------------------------------------------------------------------------
# Deterministic PyTorch-style init (uniform(-1/sqrt(fan_in), 1/sqrt(fan_in)))
# ----------------------------------------------------------------------------
def init_linear_params(key, in_features, out_features):
    k = 1.0 / np.sqrt(in_features)
    kw, kb = jax.random.split(key, 2)
    w = jax.random.uniform(kw, (out_features, in_features), jnp.float32, -k, k)
    b = jax.random.uniform(kb, (out_features,), jnp.float32, -k, k)
    return w, b


if __name__ == "__main__":
    key = jax.random.PRNGKey(0)
    k1, k2, k3, k4 = jax.random.split(key, 4)

    B = 2

    # Baseline LinearLayer instance #1: 600 -> 200
    in1, out1 = 600, 200
    x1 = jax.random.normal(k1, (B, in1), jnp.float32)
    w1, b1 = init_linear_params(k2, in1, out1)
    w1_p, b1_p = prepare_linear_params(w1, b1)   # one-time layout prep

    # Baseline LinearLayer instance #2: 800 -> 300
    in2, out2 = 800, 300
    x2 = jax.random.normal(k3, (B, in2), jnp.float32)
    w2, b2 = init_linear_params(k4, in2, out2)
    w2_p, b2_p = prepare_linear_params(w2, b2)   # one-time layout prep

    y1 = jax.block_until_ready(linear_relu(x1, w1_p, b1_p, n_out=out1))
    y2 = jax.block_until_ready(linear_relu(x2, w2_p, b2_p, n_out=out2))

    # Pure-JAX/numpy reference check (same semantics as relu(nn.Linear(x))).
    ref1 = np.maximum(np.asarray(x1) @ np.asarray(w1).T + np.asarray(b1), 0.0)
    ref2 = np.maximum(np.asarray(x2) @ np.asarray(w2).T + np.asarray(b2), 0.0)

    assert y1.shape == (B, out1)
    assert y2.shape == (B, out2)
    assert np.allclose(np.asarray(y1), ref1, atol=1e-5, rtol=1e-5)
    assert np.allclose(np.asarray(y2), ref2, atol=1e-5, rtol=1e-5)

    print("KERNEL_OK")
</pallas_src>

<mosaic_0001>
module attributes {stable_mosaic.version = 11 : i64} {
  func.func @linear_relu_kernel(%arg0: i32, %arg1: i32, %arg2: memref<8x600xf32, #tpu.memory_space<vmem>>, %arg3: memref<600x128xf32, #tpu.memory_space<vmem>>, %arg4: memref<1x128xf32, #tpu.memory_space<vmem>>, %arg5: memref<8x128xf32, #tpu.memory_space<vmem>>) attributes {dimension_semantics = [#tpu.dimension_semantics<parallel>, #tpu.dimension_semantics<parallel>], iteration_bounds = array<i64: 1, 2>, scalar_prefetch = 0 : i64, scratch_operands = 0 : i64, tpu.core_type = #tpu.core_type<tc>, window_params = [{transform_indices = @transform_0, window_bounds = array<i64: 8, 600>}, {transform_indices = @transform_1, window_bounds = array<i64: 600, 128>}, {transform_indices = @transform_2, window_bounds = array<i64: 1, 128>}, {transform_indices = @transform_3, window_bounds = array<i64: 8, 128>}]} {
    %c0 = arith.constant 0 : index
    %c0_0 = arith.constant 0 : index
    %0 = vector.load %arg2[%c0, %c0_0] : memref<8x600xf32, #tpu.memory_space<vmem>>, vector<8x600xf32>
    %c0_1 = arith.constant 0 : index
    %c0_2 = arith.constant 0 : index
    %1 = vector.load %arg3[%c0_1, %c0_2] : memref<600x128xf32, #tpu.memory_space<vmem>>, vector<600x128xf32>
    %cst = arith.constant dense<0.000000e+00> : vector<8x128xf32>
    %2 = tpu.matmul %0, %1, %cst {dimension_numbers = #tpu.dot_dimension_numbers<[1], [0], [0], [1], [0, 0, 1, 1], [], []>, precision = #tpu.contract_precision<fp32>} : vector<8x600xf32>, vector<600x128xf32>, vector<8x128xf32> -> vector<8x128xf32>
    %c0_3 = arith.constant 0 : index
    %c0_4 = arith.constant 0 : index
    %3 = vector.load %arg4[%c0_3, %c0_4] : memref<1x128xf32, #tpu.memory_space<vmem>>, vector<1x128xf32>
    %4 = vector.broadcast %3 : vector<1x128xf32> to vector<8x128xf32>
    %5 = arith.addf %2, %4 : vector<8x128xf32>
    %cst_5 = arith.constant 0.000000e+00 : f32
    %6 = vector.broadcast %cst_5 : f32 to vector<8x128xf32>
    %7 = arith.maximumf %5, %6 : vector<8x128xf32>
    %c0_6 = arith.constant 0 : index
    %c0_7 = arith.constant 0 : index
    %8 = vector.load %arg5[%c0_6, %c0_7] : memref<8x128xf32, #tpu.memory_space<vmem>>, vector<8x128xf32>
    tpu.vector_store %arg5[%c0_6, %c0_7], %7 {strides = array<i32>} : memref<8x128xf32, #tpu.memory_space<vmem>>, vector<8x128xf32>,
    return
  }
  func.func @transform_0(%arg0: i32, %arg1: i32) -> (i32, i32) {
    %c0_i32 = arith.constant 0 : i32
    %c0_i32_0 = arith.constant 0 : i32
    return %arg0, %c0_i32 : i32, i32
  }
  func.func @transform_1(%arg0: i32, %arg1: i32) -> (i32, i32) {
    %c0_i32 = arith.constant 0 : i32
    %c0_i32_0 = arith.constant 0 : i32
    return %c0_i32, %arg1 : i32, i32
  }
  func.func @transform_2(%arg0: i32, %arg1: i32) -> (i32, i32) {
    %c0_i32 = arith.constant 0 : i32
    %c0_i32_0 = arith.constant 0 : i32
    return %c0_i32, %arg1 : i32, i32
  }
  func.func @transform_3(%arg0: i32, %arg1: i32) -> (i32, i32) {
    %c0_i32 = arith.constant 0 : i32
    return %arg0, %arg1 : i32, i32
  }
}

</mosaic_0001>

<llo_original>
// kernel: linear_relu.1
$region0: #{linear_relu.1}
  #allocation0 [shape = 'u32[]', space=smem, size = 0x4, offset = 0x4, fixed_abs, tag = 'smem constant byte address 0x4 - core index']
  #allocation1 [shape = 'u32[72,128]{1,0:T(1,128)}', space=vmem, size = 0x9000, scoped, tag = 'internal scratch']
  %s0 = inlined_call_operand.vmem [shape: f32[8,600], index: 0, kind: input, shape index: {}]
  %s1 = inlined_call_operand.hbm [shape: f32[600,256], index: 1, kind: input, shape index: {}]
  %s2 = inlined_call_operand.vmem [shape: f32[1,256], index: 2, kind: input, shape index: {}]
  %s3 = inlined_call_operand.vmem [shape: f32[8,256], index: 3, kind: output, shape index: {}]
  %s4 = sld [smem:[#allocation0]]
  $region49: #{linear_relu.1} parent=0
    _
  %s6 = ssub.s32 1, %s4
  %s7 = scalar_select 0, %s6, %s4
  $region1: #{linear_relu.1} parent=0
    #allocation2 [shape = 'u8[614400]{0}', space=vmem, size = 0x96000, scoped, tag = 'input window, operand 1']
    #allocation3 [shape = 's32[2]{0}', space=sflag, size = 0x8, scoped, tag = 'scoped memory for linear_relu.1']
    %8 = vsyncpa [#allocation3], 0
    %s9 = scalar_lea.sflag [#allocation3], 1
    %10 = vsyncpa %s9, 0
    loop: start=0, step=1, limit=4
    $region2: #{linear_relu.1} parent=1 // loop_pre_header
      _
    $region3: #{linear_relu.1} parent=1 // loop_header
      %s12 = sphi 0, %s16
      %p13 = scmp.ge.s32.totalorder %s12, 4
      %s19 = sphi 0, %s31
      %s20 = sphi 0, %s27
      %s21 = sphi 0, %s19
      %s22 = sphi 0, %s20
      %s23 = sphi 0, %s21
      %s24 = sphi 0, %s22
      %s34 = sphi 0, %s36
      %s37 = sphi 0, %s34
      %s38 = sphi 0, %s37
      %s54 = sphi 0, %s38
      %s60 = sphi 0, %s62
      %s63 = sphi 0, %s60
      %s64 = sphi 0, %s63
      %s80 = sphi 0, %s64
      %s86 = sphi 0, %s88
      %s89 = sphi 0, %s86
      %s90 = sphi 0, %s89
      %s106 = sphi 0, %s90
      %s114 = sphi 0, %s116
      %s117 = sphi 0, %s114
      %s118 = sphi 0, %s117
      %s134 = sphi 0, %s118
    $region4: #{linear_relu.1} parent=1 // loop_header_branch
      %15 = sbr.rel (%p13) target = $region8
    $region5: #{linear_relu.1} parent=1 // loop_body
      %s17 = ssub.s32 %s12, 1
      %s18 = ssub.s32 %s12, 2
      %s25 = sadd.s32 1, %s20
      %p26 = scmp.ge.s32.totalorder %s25, 2
      %s27 = scalar_select %p26, 0, %s25
      %s28 = sadd.s32 1, %s19
      %s29 = scalar_select %p26, %s28, %s19
      %p30 = scmp.ge.s32.totalorder %s29, 1
      %s31 = scalar_select %p30, 0, %s29
      %s32 = ssub.s32 %s19, %s31
      %p33 = scmp.eq.s32.totalorder %s32, 0
      %s35 = sadd.s32 %s34, 1
      %s36 = scalar_select %p33, %s34, %s35
      %p39 = pneg %p33
      %p40 = scmp.eq.s32.totalorder %s12, 1
      %p41 = por %p39, %p40
      %p42 = scmp.ne.s32.totalorder %s34, %s37
      %p43 = scmp.eq.s32.totalorder %s12, 0
      %p44 = por %p42, %p43
      %p45 = scmp.ne.s32.totalorder %s34, %s37
      %p46 = scmp.eq.s32.totalorder %s17, 1
      %p47 = por %p45, %p46
      %p48 = scmp.ne.s32.totalorder %s37, %s38
      %p49 = scmp.eq.s32.totalorder %s17, 0
      %p50 = por %p48, %p49
      %p51 = scmp.ne.s32.totalorder %s37, %s38
      %p52 = scmp.eq.s32.totalorder %s18, 1
      %p53 = por %p51, %p52
      %p55 = scmp.ne.s32.totalorder %s38, %s54
      %p56 = scmp.eq.s32.totalorder %s18, 0
      %p57 = por %p55, %p56
      %s58 = ssub.s32 %s20, %s27
      %p59 = scmp.eq.s32.totalorder %s58, 0
      %s61 = sadd.s32 %s60, 1
      %s62 = scalar_select %p59, %s60, %s61
      %p65 = pneg %p59
      %p66 = scmp.eq.s32.totalorder %s12, 1
      %p67 = por %p65, %p66
      %p68 = scmp.ne.s32.totalorder %s60, %s63
      %p69 = scmp.eq.s32.totalorder %s12, 0
      %p70 = por %p68, %p69
      %p71 = scmp.ne.s32.totalorder %s60, %s63
      %p72 = scmp.eq.s32.totalorder %s17, 1
      %p73 = por %p71, %p72
      %p74 = scmp.ne.s32.totalorder %s63, %s64
      %p75 = scmp.eq.s32.totalorder %s17, 0
      %p76 = por %p74, %p75
      %p77 = scmp.ne.s32.totalorder %s63, %s64
      %p78 = scmp.eq.s32.totalorder %s18, 1
      %p79 = por %p77, %p78
      %p81 = scmp.ne.s32.totalorder %s64, %s80
      %p82 = scmp.eq.s32.totalorder %s18, 0
      %p83 = por %p81, %p82
      %s84 = ssub.s32 %s20, %s27
      %p85 = scmp.eq.s32.totalorder %s84, 0
      %s87 = sadd.s32 %s86, 1
      %s88 = scalar_select %p85, %s86, %s87
      %p91 = pneg %p85
      %p92 = scmp.eq.s32.totalorder %s12, 1
      %p93 = por %p91, %p92
      %p94 = scmp.ne.s32.totalorder %s86, %s89
      %p95 = scmp.eq.s32.totalorder %s12, 0
      %p96 = por %p94, %p95
      %p97 = scmp.ne.s32.totalorder %s86, %s89
      %p98 = scmp.eq.s32.totalorder %s17, 1
      %p99 = por %p97, %p98
      %p100 = scmp.ne.s32.totalorder %s89, %s90
      %p101 = scmp.eq.s32.totalorder %s17, 0
      %p102 = por %p100, %p101
      %p103 = scmp.ne.s32.totalorder %s89, %s90
      %p104 = scmp.eq.s32.totalorder %s18, 1
      %p105 = por %p103, %p104
      %p107 = scmp.ne.s32.totalorder %s90, %s106
      %p108 = scmp.eq.s32.totalorder %s18, 0
      %p109 = por %p107, %p108
      %s110 = ssub.s32 %s19, %s31
      %s111 = ssub.s32 %s20, %s27
      %s112 = sor.u32 %s110, %s111
      %p113 = scmp.eq.s32.totalorder %s112, 0
      %s115 = sadd.s32 %s114, 1
      %s116 = scalar_select %p113, %s114, %s115
      %p119 = pneg %p113
      %p120 = scmp.eq.s32.totalorder %s12, 1
      %p121 = por %p119, %p120
      %p122 = scmp.ne.s32.totalorder %s114, %s117
      %p123 = scmp.eq.s32.totalorder %s12, 0
      %p124 = por %p122, %p123
      %p125 = scmp.ne.s32.totalorder %s114, %s117
      %p126 = scmp.eq.s32.totalorder %s17, 1
      %p127 = por %p125, %p126
      %p128 = scmp.ne.s32.totalorder %s117, %s118
      %p129 = scmp.eq.s32.totalorder %s17, 0
      %p130 = por %p128, %p129
      %p131 = scmp.ne.s32.totalorder %s117, %s118
      %p132 = scmp.eq.s32.totalorder %s18, 1
      %p133 = por %p131, %p132
      %p135 = scmp.ne.s32.totalorder %s118, %s134
      %p136 = scmp.eq.s32.totalorder %s18, 0
      %p137 = por %p135, %p136
      %p138 = scmp.le.s32.totalorder 1, %s12
      %p139 = scmp.lt.s32.totalorder %s12, 3
      %p140 = pnand %p138, %p139
      %p141 = pneg %p140
      // Predicated region
      $region9: #{linear_relu.1} parent=5 // pred_check
        _
      $region10: #{linear_relu.1} parent=5 // pred_check_branch
        %143 = sbr.rel (%p140) target = $region12
      $region11: #{linear_relu.1} parent=5 // pred_region
        %s144 = ssub.s32 %s12, 1
        // Predicated region
        $region13: #{linear_relu.1} parent=11 // pred_check
          %p145 = pneg %p50
        $region14: #{linear_relu.1} parent=11 // pred_check_branch
          %147 = sbr.rel (%p145) target = $region16
        $region15: #{linear_relu.1} parent=11 // pred_region
          %p148 = scmp.lt.s32.totalorder %s21, 0
          %s149 = scalar_select %p148, %s21, 0
          %s150 = smul.addr %s149, 5
          %s151 = smul.addr %s150, 8
          %s152 = scalar_lea.vmem %s0, %s151
        $region16: #{linear_relu.1} parent=11 // pred_fallthru
          _
      $region12: #{linear_relu.1} parent=5 // pred_fallthru
        _
      %p153 = scmp.lt.s32.totalorder %s12, 2
      // Predicated region
      $region17: #{linear_relu.1} parent=5 // pred_check
        %p154 = pneg %p153
      $region18: #{linear_relu.1} parent=5 // pred_check_branch
        %156 = sbr.rel (%p154) target = $region20
      $region19: #{linear_relu.1} parent=5 // pred_region
        // Predicated region
        $region21: #{linear_relu.1} parent=19 // pred_check
          %p157 = pneg %p70
        $region22: #{linear_relu.1} parent=19 // pred_check_branch
          %159 = sbr.rel (%p157) target = $region24
        $region23: #{linear_relu.1} parent=19 // pred_region
          %s160 = sand.u32 %s60, 1
          %s161 = scalar_lea.sflag [#allocation3], %s160
          %s162 = sand.u32 %s60, 1
          %s163 = smul.addr %s162, 600
          %s164 = scalar_lea.vmem [#allocation2], %s163
          %166 = vsyncadd %s161, 0
          %s167 = smul.addr %s20, 8
          %s168 = scalar_lea.hbm %s1, %s167
          %s169 = sshll.u32 %s168, 4
          %s170 = int_to_ptr.hbm [resolvable:$true] %s169
          %s171 = sshll.u32 %s164, 4
          %s172 = int_to_ptr.vmem [resolvable:$true] %s171
          %177 = dma.hbm_to_vmem [thread:$0]  %s170, 9600, %s172, %s161, 256, 128, 8
        $region24: #{linear_relu.1} parent=19 // pred_fallthru
          _
        // Predicated region
        $region25: #{linear_relu.1} parent=19 // pred_check
          %p178 = pneg %p96
        $region26: #{linear_relu.1} parent=19 // pred_check_branch
          %180 = sbr.rel (%p178) target = $region28
        $region27: #{linear_relu.1} parent=19 // pred_region
          %p181 = scmp.lt.s32.totalorder %s20, 1
          %s182 = scalar_select %p181, %s20, 1
          %s183 = scalar_lea.vmem %s2, %s182
        $region28: #{linear_relu.1} parent=19 // pred_fallthru
          _
      $region20: #{linear_relu.1} parent=5 // pred_fallthru
        _
      %p184 = scmp.le.s32.totalorder 1, %s12
      %p185 = scmp.lt.s32.totalorder %s12, 3
      %p186 = pnand %p184, %p185
      %p187 = pneg %p186
      // Predicated region
      $region29: #{linear_relu.1} parent=5 // pred_check
        _
      $region30: #{linear_relu.1} parent=5 // pred_check_branch
        %189 = sbr.rel (%p186) target = $region32
      $region31: #{linear_relu.1} parent=5 // pred_region
        %s190 = ssub.s32 %s12, 1
        %s191 = sand.u32 %s63, 1
        %s192 = scalar_lea.sflag [#allocation3], %s191
        %s193 = sand.u32 %s63, 1
        %s194 = smul.addr %s193, 600
        %s195 = scalar_lea.vmem [#allocation2], %s194
        // Predicated region
        $region33: #{linear_relu.1} parent=31 // pred_check
          %p196 = pneg %p76
        $region34: #{linear_relu.1} parent=31 // pred_check_branch
          %198 = sbr.rel (%p196) target = $region36
        $region35: #{linear_relu.1} parent=31 // pred_region
          %200 = dma.done %s192, 9600
        $region36: #{linear_relu.1} parent=31 // pred_fallthru
          _
        %p201 = scmp.lt.s32.totalorder %s21, 0
        %s202 = scalar_select %p201, %s21, 0
        %s203 = smul.addr %s202, 5
        %s204 = smul.addr %s203, 8
        %s205 = scalar_lea.vmem %s0, %s204
        %p206 = pneg %p50
        %p207 = pneg %p47
        %s208 = sand.u32 %s63, 1
        %s209 = scalar_lea.sflag [#allocation3], %s208
        %s210 = sand.u32 %s63, 1
        %s211 = smul.addr %s210, 600
        %s212 = scalar_lea.vmem [#allocation2], %s211
        %p213 = pneg %p76
        %p214 = pneg %p73
        %p215 = scmp.lt.s32.totalorder %s22, 1
        %s216 = scalar_select %p215, %s22, 1
        %s217 = scalar_lea.vmem %s2, %s216
        %p218 = pneg %p102
        %p219 = pneg %p99
        %p220 = pneg %p130
        %p221 = pneg %p127
        %p222 = scmp.lt.s32.totalorder %s21, 0
        %s223 = scalar_select %p222, %s21, 0
        %p224 = scmp.lt.s32.totalorder %s22, 1
        %s225 = scalar_select %p224, %s22, 1
        %s226 = smul.addr %s223, 2
        %s227 = sadd.s32 %s225, %s226
        %s228 = smul.addr %s227, 8
        %s229 = scalar_lea.vmem %s3, %s228
        %p230 = scmp.lt.s32.totalorder %s21, 0
        %s231 = scalar_select %p230, %s21, 0
        %s232 = smul.addr %s231, 5
        %s233 = smul.addr %s232, 8
        %s234 = scalar_lea.vmem %s0, %s233
        %p235 = scmp.lt.s32.totalorder %s22, 1
        %s236 = scalar_select %p235, %s22, 1
        %s237 = scalar_lea.vmem %s2, %s236
        %p238 = scmp.lt.s32.totalorder %s21, 0
        %s239 = scalar_select %p238, %s21, 0
        %p240 = scmp.lt.s32.totalorder %s22, 1
        %s241 = scalar_select %p240, %s22, 1
        %s242 = smul.addr %s239, 2
        %s243 = sadd.s32 %s241, %s242
        %s244 = smul.addr %s243, 8
        %s245 = scalar_lea.vmem %s3, %s244
        %v246 = vld [vmem:[%s234] sm:$0xff]
        %v247 = vld [vmem:[%s234 + $0x8] sm:$0xff]
        %v248 = vld [vmem:[%s234 + $0x10] sm:$0xff]
        %v249 = vld [vmem:[%s234 + $0x18] sm:$0xff]
        %v250 = vld [vmem:[%s234 + $0x20] sm:$0xff]
        %v251 = vld [vmem:[%s195] sm:$0xff]
        %v252 = vld [vmem:[%s195 + $0x8] sm:$0xff]
        %v253 = vld [vmem:[%s195 + $0x10] sm:$0xff]
        %v254 = vld [vmem:[%s195 + $0x18] sm:$0xff]
        %v255 = vld [vmem:[%s195 + $0x20] sm:$0xff]
        %v256 = vld [vmem:[%s195 + $0x28] sm:$0xff]
        %v257 = vld [vmem:[%s195 + $0x30] sm:$0xff]
        %v258 = vld [vmem:[%s195 + $0x38] sm:$0xff]
        %v259 = vld [vmem:[%s195 + $0x40] sm:$0xff]
        %v260 = vld [vmem:[%s195 + $0x48] sm:$0xff]
        %v261 = vld [vmem:[%s195 + $0x50] sm:$0xff]
        %v262 = vld [vmem:[%s195 + $0x58] sm:$0xff]
        %v263 = vld [vmem:[%s195 + $0x60] sm:$0xff]
        %v264 = vld [vmem:[%s195 + $0x68] sm:$0xff]
        %v265 = vld [vmem:[%s195 + $0x70] sm:$0xff]
        %v266 = vld [vmem:[%s195 + $0x78] sm:$0xff]
        %v267 = vld [vmem:[%s195 + $0x80] sm:$0xff]
        %v268 = vld [vmem:[%s195 + $0x88] sm:$0xff]
        %v269 = vld [vmem:[%s195 + $0x90] sm:$0xff]
        %v270 = vld [vmem:[%s195 + $0x98] sm:$0xff]
        %v271 = vld [vmem:[%s195 + $0xa0] sm:$0xff]
        %v272 = vld [vmem:[%s195 + $0xa8] sm:$0xff]
        %v273 = vld [vmem:[%s195 + $0xb0] sm:$0xff]
        %v274 = vld [vmem:[%s195 + $0xb8] sm:$0xff]
        %v275 = vld [vmem:[%s195 + $0xc0] sm:$0xff]
        %v276 = vld [vmem:[%s195 + $0xc8] sm:$0xff]
        %v277 = vld [vmem:[%s195 + $0xd0] sm:$0xff]
        %v278 = vld [vmem:[%s195 + $0xd8] sm:$0xff]
        %v279 = vld [vmem:[%s195 + $0xe0] sm:$0xff]
        %v280 = vld [vmem:[%s195 + $0xe8] sm:$0xff]
        %v281 = vld [vmem:[%s195 + $0xf0] sm:$0xff]
        %v282 = vld [vmem:[%s195 + $0xf8] sm:$0xff]
        %v283 = vld [vmem:[%s195 + $0x100] sm:$0xff]
        %v284 = vld [vmem:[%s195 + $0x108] sm:$0xff]
        %v285 = vld [vmem:[%s195 + $0x110] sm:$0xff]
        %v286 = vld [vmem:[%s195 + $0x118] sm:$0xff]
        %v287 = vld [vmem:[%s195 + $0x120] sm:$0xff]
        %v288 = vld [vmem:[%s195 + $0x128] sm:$0xff]
        %v289 = vld [vmem:[%s195 + $0x130] sm:$0xff]
        %v290 = vld [vmem:[%s195 + $0x138] sm:$0xff]
        %v291 = vld [vmem:[%s195 + $0x140] sm:$0xff]
        %v292 = vld [vmem:[%s195 + $0x148] sm:$0xff]
        %v293 = vld [vmem:[%s195 + $0x150] sm:$0xff]
        %v294 = vld [vmem:[%s195 + $0x158] sm:$0xff]
        %v295 = vld [vmem:[%s195 + $0x160] sm:$0xff]
        %v296 = vld [vmem:[%s195 + $0x168] sm:$0xff]
        %v297 = vld [vmem:[%s195 + $0x170] sm:$0xff]
        %v298 = vld [vmem:[%s195 + $0x178] sm:$0xff]
        %v299 = vld [vmem:[%s195 + $0x180] sm:$0xff]
        %v300 = vld [vmem:[%s195 + $0x188] sm:$0xff]
        %v301 = vld [vmem:[%s195 + $0x190] sm:$0xff]
        %v302 = vld [vmem:[%s195 + $0x198] sm:$0xff]
        %v303 = vld [vmem:[%s195 + $0x1a0] sm:$0xff]
        %v304 = vld [vmem:[%s195 + $0x1a8] sm:$0xff]
        %v305 = vld [vmem:[%s195 + $0x1b0] sm:$0xff]
        %v306 = vld [vmem:[%s195 + $0x1b8] sm:$0xff]
        %v307 = vld [vmem:[%s195 + $0x1c0] sm:$0xff]
        %v308 = vld [vmem:[%s195 + $0x1c8] sm:$0xff]
        %v309 = vld [vmem:[%s195 + $0x1d0] sm:$0xff]
        %v310 = vld [vmem:[%s195 + $0x1d8] sm:$0xff]
        %v311 = vld [vmem:[%s195 + $0x1e0] sm:$0xff]
        %v312 = vld [vmem:[%s195 + $0x1e8] sm:$0xff]
        %v313 = vld [vmem:[%s195 + $0x1f0] sm:$0xff]
        %v314 = vld [vmem:[%s195 + $0x1f8] sm:$0xff]
        %v315 = vld [vmem:[%s195 + $0x200] sm:$0xff]
        %v316 = vld [vmem:[%s195 + $0x208] sm:$0xff]
        %v317 = vld [vmem:[%s195 + $0x210] sm:$0xff]
        %v318 = vld [vmem:[%s195 + $0x218] sm:$0xff]
        %v319 = vld [vmem:[%s195 + $0x220] sm:$0xff]
        %v320 = vld [vmem:[%s195 + $0x228] sm:$0xff]
        %v321 = vld [vmem:[%s195 + $0x230] sm:$0xff]
        %v322 = vld [vmem:[%s195 + $0x238] sm:$0xff]
        %v323 = vld [vmem:[%s195 + $0x240] sm:$0xff]
        %v324 = vld [vmem:[%s195 + $0x248] sm:$0xff]
        %v325 = vld [vmem:[%s195 + $0x250] sm:$0xff]
        %v326 = vld [vmem:[%s237] sm:$0x1]
        %v328 = vperm.slane %v326, 0
        %vm330 = vcmask 719872
        %v332 = vsel %vm330, %v250, 0
        %v334 = vand.u32 %v266, 4294901760
        %335 = vmatpush.msra.mxu0 %v334
        %v336 = vand.u32 %v265, 4294901760
        %337 = vmatpush.msra.mxu0 %v336
        %v338 = vand.u32 %v264, 4294901760
        %339 = vmatpush.msra.mxu0 %v338
        %v340 = vand.u32 %v263, 4294901760
        %341 = vmatpush.msra.mxu0 %v340
        %v342 = vand.u32 %v262, 4294901760
        %343 = vmatpush.msra.mxu0 %v342
        %v344 = vand.u32 %v261, 4294901760
        %345 = vmatpush.msra.mxu0 %v344
        %v346 = vand.u32 %v260, 4294901760
        %347 = vmatpush.msra.mxu0 %v346
        %v348 = vand.u32 %v259, 4294901760
        %349 = vmatpush.msra.mxu0 %v348
        %v350 = vand.u32 %v258, 4294901760
        %351 = vmatpush.msra.mxu0 %v350
        %v352 = vand.u32 %v257, 4294901760
        %353 = vmatpush.msra.mxu0 %v352
        %v354 = vand.u32 %v256, 4294901760
        %355 = vmatpush.msra.mxu0 %v354
        %v356 = vand.u32 %v255, 4294901760
        %357 = vmatpush.msra.mxu0 %v356
        %v358 = vand.u32 %v254, 4294901760
        %359 = vmatpush.msra.mxu0 %v358
        %v360 = vand.u32 %v253, 4294901760
        %361 = vmatpush.msra.mxu0 %v360
        %v362 = vand.u32 %v252, 4294901760
        %363 = vmatpush.msra.mxu0 %v362
        %v364 = vand.u32 %v251, 4294901760
        %365 = vmatpush.msra.mxu0 %v364
        %v366 = vand.u32 %v246, 4294901760
        %v367 = vsub.f32 %v246, %v366
        %v368 = vand.u32 %v367, 4294901760
        %v369 = vsub.f32 %v367, %v368
        %v370 = vand.u32 %v369, 4294901760
        %371 = vmatmul.f32.gmra.mxu0 %v370
        %v372 = vpop.f32.mrf.mxu0
        %v373 = vadd.f32 %v328, %v372
        %374 = vdwg.mxu0
        %v375 = vand.u32 %v266, 4294901760
        %v376 = vsub.f32 %v266, %v375
        %v377 = vand.u32 %v376, 4294901760
        %v378 = vsub.f32 %v376, %v377
        %v379 = vand.u32 %v378, 4294901760
        %380 = vmatpush.msra.mxu0 %v379
        %v381 = vand.u32 %v265, 4294901760
        %v382 = vsub.f32 %v265, %v381
        %v383 = vand.u32 %v382, 4294901760
        %v384 = vsub.f32 %v382, %v383
        %v385 = vand.u32 %v384, 4294901760
        %386 = vmatpush.msra.mxu0 %v385
        %v387 = vand.u32 %v264, 4294901760
        %v388 = vsub.f32 %v264, %v387
        %v389 = vand.u32 %v388, 4294901760
        %v390 = vsub.f32 %v388, %v389
        %v391 = vand.u32 %v390, 4294901760
        %392 = vmatpush.msra.mxu0 %v391
        %v393 = vand.u32 %v263, 4294901760
        %v394 = vsub.f32 %v263, %v393
        %v395 = vand.u32 %v394, 4294901760
        %v396 = vsub.f32 %v394, %v395
        %v397 = vand.u32 %v396, 4294901760
        %398 = vmatpush.msra.mxu0 %v397
        %v399 = vand.u32 %v262, 4294901760
        %v400 = vsub.f32 %v262, %v399
        %v401 = vand.u32 %v400, 4294901760
        %v402 = vsub.f32 %v400, %v401
        %v403 = vand.u32 %v402, 4294901760
        %404 = vmatpush.msra.mxu0 %v403
        %v405 = vand.u32 %v261, 4294901760
        %v406 = vsub.f32 %v261, %v405
        %v407 = vand.u32 %v406, 4294901760
        %v408 = vsub.f32 %v406, %v407
        %v409 = vand.u32 %v408, 4294901760
        %410 = vmatpush.msra.mxu0 %v409
        %v411 = vand.u32 %v260, 4294901760
        %v412 = vsub.f32 %v260, %v411
        %v413 = vand.u32 %v412, 4294901760
        %v414 = vsub.f32 %v412, %v413
        %v415 = vand.u32 %v414, 4294901760
        %416 = vmatpush.msra.mxu0 %v415
        %v417 = vand.u32 %v259, 4294901760
        %v418 = vsub.f32 %v259, %v417
        %v419 = vand.u32 %v418, 4294901760
        %v420 = vsub.f32 %v418, %v419
        %v421 = vand.u32 %v420, 4294901760
        %422 = vmatpush.msra.mxu0 %v421
        %v423 = vand.u32 %v258, 4294901760
        %v424 = vsub.f32 %v258, %v423
        %v425 = vand.u32 %v424, 4294901760
        %v426 = vsub.f32 %v424, %v425
        %v427 = vand.u32 %v426, 4294901760
        %428 = vmatpush.msra.mxu0 %v427
        %v429 = vand.u32 %v257, 4294901760
        %v430 = vsub.f32 %v257, %v429
        %v431 = vand.u32 %v430, 4294901760
        %v432 = vsub.f32 %v430, %v431
        %v433 = vand.u32 %v432, 4294901760
        %434 = vmatpush.msra.mxu0 %v433
        %v435 = vand.u32 %v256, 4294901760
        %v436 = vsub.f32 %v256, %v435
        %v437 = vand.u32 %v436, 4294901760
        %v438 = vsub.f32 %v436, %v437
        %v439 = vand.u32 %v438, 4294901760
        %440 = vmatpush.msra.mxu0 %v439
        %v441 = vand.u32 %v255, 4294901760
        %v442 = vsub.f32 %v255, %v441
        %v443 = vand.u32 %v442, 4294901760
        %v444 = vsub.f32 %v442, %v443
        %v445 = vand.u32 %v444, 4294901760
        %446 = vmatpush.msra.mxu0 %v445
        %v447 = vand.u32 %v254, 4294901760
        %v448 = vsub.f32 %v254, %v447
        %v449 = vand.u32 %v448, 4294901760
        %v450 = vsub.f32 %v448, %v449
        %v451 = vand.u32 %v450, 4294901760
        %452 = vmatpush.msra.mxu0 %v451
        %v453 = vand.u32 %v253, 4294901760
        %v454 = vsub.f32 %v253, %v453
        %v455 = vand.u32 %v454, 4294901760
        %v456 = vsub.f32 %v454, %v455
        %v457 = vand.u32 %v456, 4294901760
        %458 = vmatpush.msra.mxu0 %v457
        %v459 = vand.u32 %v252, 4294901760
        %v460 = vsub.f32 %v252, %v459
        %v461 = vand.u32 %v460, 4294901760
        %v462 = vsub.f32 %v460, %v461
        %v463 = vand.u32 %v462, 4294901760
        %464 = vmatpush.msra.mxu0 %v463
        %v465 = vand.u32 %v251, 4294901760
        %v466 = vsub.f32 %v251, %v465
        %v467 = vand.u32 %v466, 4294901760
        %v468 = vsub.f32 %v466, %v467
        %v469 = vand.u32 %v468, 4294901760
        %470 = vmatpush.msra.mxu0 %v469
        %v471 = vand.u32 %v246, 4294901760
        %472 = vmatmul.f32.gmra.mxu0 %v471
        %v473 = vpop.f32.mrf.mxu0
        %v474 = vadd.f32 %v373, %v473
        %475 = vdwg.mxu0
        %v476 = vand.u32 %v266, 4294901760
        %v477 = vsub.f32 %v266, %v476
        %478 = vmatpush.msra.mxu0 %v477
        %v479 = vand.u32 %v265, 4294901760
        %v480 = vsub.f32 %v265, %v479
        %481 = vmatpush.msra.mxu0 %v480
        %v482 = vand.u32 %v264, 4294901760
        %v483 = vsub.f32 %v264, %v482
        %484 = vmatpush.msra.mxu0 %v483
        %v485 = vand.u32 %v263, 4294901760
        %v486 = vsub.f32 %v263, %v485
        %487 = vmatpush.msra.mxu0 %v486
        %v488 = vand.u32 %v262, 4294901760
        %v489 = vsub.f32 %v262, %v488
        %490 = vmatpush.msra.mxu0 %v489
        %v491 = vand.u32 %v261, 4294901760
        %v492 = vsub.f32 %v261, %v491
        %493 = vmatpush.msra.mxu0 %v492
        %v494 = vand.u32 %v260, 4294901760
        %v495 = vsub.f32 %v260, %v494
        %496 = vmatpush.msra.mxu0 %v495
        %v497 = vand.u32 %v259, 4294901760
        %v498 = vsub.f32 %v259, %v497
        %499 = vmatpush.msra.mxu0 %v498
        %v500 = vand.u32 %v258, 4294901760
        %v501 = vsub.f32 %v258, %v500
        %502 = vmatpush.msra.mxu0 %v501
        %v503 = vand.u32 %v257, 4294901760
        %v504 = vsub.f32 %v257, %v503
        %505 = vmatpush.msra.mxu0 %v504
        %v506 = vand.u32 %v256, 4294901760
        %v507 = vsub.f32 %v256, %v506
        %508 = vmatpush.msra.mxu0 %v507
        %v509 = vand.u32 %v255, 4294901760
        %v510 = vsub.f32 %v255, %v509
        %511 = vmatpush.msra.mxu0 %v510
        %v512 = vand.u32 %v254, 4294901760
        %v513 = vsub.f32 %v254, %v512
        %514 = vmatpush.msra.mxu0 %v513
        %v515 = vand.u32 %v253, 4294901760
        %v516 = vsub.f32 %v253, %v515
        %517 = vmatpush.msra.mxu0 %v516
        %v518 = vand.u32 %v252, 4294901760
        %v519 = vsub.f32 %v252, %v518
        %520 = vmatpush.msra.mxu0 %v519
        %v521 = vand.u32 %v251, 4294901760
        %v522 = vsub.f32 %v251, %v521
        %523 = vmatpush.msra.mxu0 %v522
        %v524 = vand.u32 %v246, 4294901760
        %v525 = vsub.f32 %v246, %v524
        %526 = vmatmul.f32.gmra.mxu0 %v525
        %v527 = vpop.f32.mrf.mxu0
        %v528 = vadd.f32 %v474, %v527
        %529 = vdwg.mxu0
        %v530 = vand.u32 %v266, 4294901760
        %531 = vmatpush.msra.mxu0 %v530
        %v532 = vand.u32 %v265, 4294901760
        %533 = vmatpush.msra.mxu0 %v532
        %v534 = vand.u32 %v264, 4294901760
        %535 = vmatpush.msra.mxu0 %v534
        %v536 = vand.u32 %v263, 4294901760
        %537 = vmatpush.msra.mxu0 %v536
        %v538 = vand.u32 %v262, 4294901760
        %539 = vmatpush.msra.mxu0 %v538
        %v540 = vand.u32 %v261, 4294901760
        %541 = vmatpush.msra.mxu0 %v540
        %v542 = vand.u32 %v260, 4294901760
        %543 = vmatpush.msra.mxu0 %v542
        %v544 = vand.u32 %v259, 4294901760
        %545 = vmatpush.msra.mxu0 %v544
        %v546 = vand.u32 %v258, 4294901760
        %547 = vmatpush.msra.mxu0 %v546
        %v548 = vand.u32 %v257, 4294901760
        %549 = vmatpush.msra.mxu0 %v548
        %v550 = vand.u32 %v256, 4294901760
        %551 = vmatpush.msra.mxu0 %v550
        %v552 = vand.u32 %v255, 4294901760
        %553 = vmatpush.msra.mxu0 %v552
        %v554 = vand.u32 %v254, 4294901760
        %555 = vmatpush.msra.mxu0 %v554
        %v556 = vand.u32 %v253, 4294901760
        %557 = vmatpush.msra.mxu0 %v556
        %v558 = vand.u32 %v252, 4294901760
        %559 = vmatpush.msra.mxu0 %v558
        %v560 = vand.u32 %v251, 4294901760
        %561 = vmatpush.msra.mxu0 %v560
        %v562 = vand.u32 %v246, 4294901760
        %v563 = vsub.f32 %v246, %v562
        %v564 = vand.u32 %v563, 4294901760
        %565 = vmatmul.f32.gmra.mxu0 %v564
        %v566 = vpop.f32.mrf.mxu0
        %v567 = vadd.f32 %v528, %v566
        %568 = vdwg.mxu0
        %v569 = vand.u32 %v266, 4294901760
        %v570 = vsub.f32 %v266, %v569
        %v571 = vand.u32 %v570, 4294901760
        %572 = vmatpush.msra.mxu0 %v571
        %v573 = vand.u32 %v265, 4294901760
        %v574 = vsub.f32 %v265, %v573
        %v575 = vand.u32 %v574, 4294901760
        %576 = vmatpush.msra.mxu0 %v575
        %v577 = vand.u32 %v264, 4294901760
        %v578 = vsub.f32 %v264, %v577
        %v579 = vand.u32 %v578, 4294901760
        %580 = vmatpush.msra.mxu0 %v579
        %v581 = vand.u32 %v263, 4294901760
        %v582 = vsub.f32 %v263, %v581
        %v583 = vand.u32 %v582, 4294901760
        %584 = vmatpush.msra.mxu0 %v583
        %v585 = vand.u32 %v262, 4294901760
        %v586 = vsub.f32 %v262, %v585
        %v587 = vand.u32 %v586, 4294901760
        %588 = vmatpush.msra.mxu0 %v587
        %v589 = vand.u32 %v261, 4294901760
        %v590 = vsub.f32 %v261, %v589
        %v591 = vand.u32 %v590, 4294901760
        %592 = vmatpush.msra.mxu0 %v591
        %v593 = vand.u32 %v260, 4294901760
        %v594 = vsub.f32 %v260, %v593
        %v595 = vand.u32 %v594, 4294901760
        %596 = vmatpush.msra.mxu0 %v595
        %v597 = vand.u32 %v259, 4294901760
        %v598 = vsub.f32 %v259, %v597
        %v599 = vand.u32 %v598, 4294901760
        %600 = vmatpush.msra.mxu0 %v599
        %v601 = vand.u32 %v258, 4294901760
        %v602 = vsub.f32 %v258, %v601
        %v603 = vand.u32 %v602, 4294901760
        %604 = vmatpush.msra.mxu0 %v603
        %v605 = vand.u32 %v257, 4294901760
        %v606 = vsub.f32 %v257, %v605
        %v607 = vand.u32 %v606, 4294901760
        %608 = vmatpush.msra.mxu0 %v607
        %v609 = vand.u32 %v256, 4294901760
        %v610 = vsub.f32 %v256, %v609
        %v611 = vand.u32 %v610, 4294901760
        %612 = vmatpush.msra.mxu0 %v611
        %v613 = vand.u32 %v255, 4294901760
        %v614 = vsub.f32 %v255, %v613
        %v615 = vand.u32 %v614, 4294901760
        %616 = vmatpush.msra.mxu0 %v615
        %v617 = vand.u32 %v254, 4294901760
        %v618 = vsub.f32 %v254, %v617
        %v619 = vand.u32 %v618, 4294901760
        %620 = vmatpush.msra.mxu0 %v619
        %v621 = vand.u32 %v253, 4294901760
        %v622 = vsub.f32 %v253, %v621
        %v623 = vand.u32 %v622, 4294901760
        %624 = vmatpush.msra.mxu0 %v623
        %v625 = vand.u32 %v252, 4294901760
        %v626 = vsub.f32 %v252, %v625
        %v627 = vand.u32 %v626, 4294901760
        %628 = vmatpush.msra.mxu0 %v627
        %v629 = vand.u32 %v251, 4294901760
        %v630 = vsub.f32 %v251, %v629
        %v631 = vand.u32 %v630, 4294901760
        %632 = vmatpush.msra.mxu0 %v631
        %v633 = vand.u32 %v246, 4294901760
        %634 = vmatmul.f32.gmra.mxu0 %v633
        %v635 = vpop.f32.mrf.mxu0
        %v636 = vadd.f32 %v567, %v635
        %637 = vdwg.mxu0
        %v638 = vand.u32 %v266, 4294901760
        %639 = vmatpush.msra.mxu0 %v638
        %v640 = vand.u32 %v265, 4294901760
        %641 = vmatpush.msra.mxu0 %v640
        %v642 = vand.u32 %v264, 4294901760
        %643 = vmatpush.msra.mxu0 %v642
        %v644 = vand.u32 %v263, 4294901760
        %645 = vmatpush.msra.mxu0 %v644
        %v646 = vand.u32 %v262, 4294901760
        %647 = vmatpush.msra.mxu0 %v646
        %v648 = vand.u32 %v261, 4294901760
        %649 = vmatpush.msra.mxu0 %v648
        %v650 = vand.u32 %v260, 4294901760
        %651 = vmatpush.msra.mxu0 %v650
        %v652 = vand.u32 %v259, 4294901760
        %653 = vmatpush.msra.mxu0 %v652
        %v654 = vand.u32 %v258, 4294901760
        %655 = vmatpush.msra.mxu0 %v654
        %v656 = vand.u32 %v257, 4294901760
        %657 = vmatpush.msra.mxu0 %v656
        %v658 = vand.u32 %v256, 4294901760
        %659 = vmatpush.msra.mxu0 %v658
        %v660 = vand.u32 %v255, 4294901760
        %661 = vmatpush.msra.mxu0 %v660
        %v662 = vand.u32 %v254, 4294901760
        %663 = vmatpush.msra.mxu0 %v662
        %v664 = vand.u32 %v253, 4294901760
        %665 = vmatpush.msra.mxu0 %v664
        %v666 = vand.u32 %v252, 4294901760
        %667 = vmatpush.msra.mxu0 %v666
        %v668 = vand.u32 %v251, 4294901760
        %669 = vmatpush.msra.mxu0 %v668
        %v670 = vand.u32 %v246, 4294901760
        %671 = vmatmul.f32.gmra.mxu0 %v670
        %v672 = vpop.f32.mrf.mxu0
        %v673 = vadd.f32 %v636, %v672
        %674 = vdwg.mxu0
        %v675 = vand.u32 %v282, 4294901760
        %676 = vmatpush.msra.mxu0 %v675
        %v677 = vand.u32 %v281, 4294901760
        %678 = vmatpush.msra.mxu0 %v677
        %v679 = vand.u32 %v280, 4294901760
        %680 = vmatpush.msra.mxu0 %v679
        %v681 = vand.u32 %v279, 4294901760
        %682 = vmatpush.msra.mxu0 %v681
        %v683 = vand.u32 %v278, 4294901760
        %684 = vmatpush.msra.mxu0 %v683
        %v685 = vand.u32 %v277, 4294901760
        %686 = vmatpush.msra.mxu0 %v685
        %v687 = vand.u32 %v276, 4294901760
        %688 = vmatpush.msra.mxu0 %v687
        %v689 = vand.u32 %v275, 4294901760
        %690 = vmatpush.msra.mxu0 %v689
        %v691 = vand.u32 %v274, 4294901760
        %692 = vmatpush.msra.mxu0 %v691
        %v693 = vand.u32 %v273, 4294901760
        %694 = vmatpush.msra.mxu0 %v693
        %v695 = vand.u32 %v272, 4294901760
        %696 = vmatpush.msra.mxu0 %v695
        %v697 = vand.u32 %v271, 4294901760
        %698 = vmatpush.msra.mxu0 %v697
        %v699 = vand.u32 %v270, 4294901760
        %700 = vmatpush.msra.mxu0 %v699
        %v701 = vand.u32 %v269, 4294901760
        %702 = vmatpush.msra.mxu0 %v701
        %v703 = vand.u32 %v268, 4294901760
        %704 = vmatpush.msra.mxu0 %v703
        %v705 = vand.u32 %v267, 4294901760
        %706 = vmatpush.msra.mxu0 %v705
        %v707 = vand.u32 %v247, 4294901760
        %v708 = vsub.f32 %v247, %v707
        %v709 = vand.u32 %v708, 4294901760
        %v710 = vsub.f32 %v708, %v709
        %v711 = vand.u32 %v710, 4294901760
        %712 = vmatmul.f32.gmra.mxu0 %v711
        %v713 = vpop.f32.mrf.mxu0
        %v714 = vadd.f32 %v673, %v713
        %715 = vdwg.mxu0
        %v716 = vand.u32 %v282, 4294901760
        %v717 = vsub.f32 %v282, %v716
        %v718 = vand.u32 %v717, 4294901760
        %v719 = vsub.f32 %v717, %v718
        %v720 = vand.u32 %v719, 4294901760
        %721 = vmatpush.msra.mxu0 %v720
        %v722 = vand.u32 %v281, 4294901760
        %v723 = vsub.f32 %v281, %v722
        %v724 = vand.u32 %v723, 4294901760
        %v725 = vsub.f32 %v723, %v724
        %v726 = vand.u32 %v725, 4294901760
        %727 = vmatpush.msra.mxu0 %v726
        %v728 = vand.u32 %v280, 4294901760
        %v729 = vsub.f32 %v280, %v728
        %v730 = vand.u32 %v729, 4294901760
        %v731 = vsub.f32 %v729, %v730
        %v732 = vand.u32 %v731, 4294901760
        %733 = vmatpush.msra.mxu0 %v732
        %v734 = vand.u32 %v279, 4294901760
        %v735 = vsub.f32 %v279, %v734
        %v736 = vand.u32 %v735, 4294901760
        %v737 = vsub.f32 %v735, %v736
        %v738 = vand.u32 %v737, 4294901760
        %739 = vmatpush.msra.mxu0 %v738
        %v740 = vand.u32 %v278, 4294901760
        %v741 = vsub.f32 %v278, %v740
        %v742 = vand.u32 %v741, 4294901760
        %v743 = vsub.f32 %v741, %v742
        %v744 = vand.u32 %v743, 4294901760
        %745 = vmatpush.msra.mxu0 %v744
        %v746 = vand.u32 %v277, 4294901760
        %v747 = vsub.f32 %v277, %v746
        %v748 = vand.u32 %v747, 4294901760
        %v749 = vsub.f32 %v747, %v748
        %v750 = vand.u32 %v749, 4294901760
        %751 = vmatpush.msra.mxu0 %v750
        %v752 = vand.u32 %v276, 4294901760
        %v753 = vsub.f32 %v276, %v752
        %v754 = vand.u32 %v753, 4294901760
        %v755 = vsub.f32 %v753, %v754
        %v756 = vand.u32 %v755, 4294901760
        %757 = vmatpush.msra.mxu0 %v756
        %v758 = vand.u32 %v275, 4294901760
        %v759 = vsub.f32 %v275, %v758
        %v760 = vand.u32 %v759, 4294901760
        %v761 = vsub.f32 %v759, %v760
        %v762 = vand.u32 %v761, 4294901760
        %763 = vmatpush.msra.mxu0 %v762
        %v764 = vand.u32 %v274, 4294901760
        %v765 = vsub.f32 %v274, %v764
        %v766 = vand.u32 %v765, 4294901760
        %v767 = vsub.f32 %v765, %v766
        %v768 = vand.u32 %v767, 4294901760
        %769 = vmatpush.msra.mxu0 %v768
        %v770 = vand.u32 %v273, 4294901760
        %v771 = vsub.f32 %v273, %v770
        %v772 = vand.u32 %v771, 4294901760
        %v773 = vsub.f32 %v771, %v772
        %v774 = vand.u32 %v773, 4294901760
        %775 = vmatpush.msra.mxu0 %v774
        %v776 = vand.u32 %v272, 4294901760
        %v777 = vsub.f32 %v272, %v776
        %v778 = vand.u32 %v777, 4294901760
        %v779 = vsub.f32 %v777, %v778
        %v780 = vand.u32 %v779, 4294901760
        %781 = vmatpush.msra.mxu0 %v780
        %v782 = vand.u32 %v271, 4294901760
        %v783 = vsub.f32 %v271, %v782
        %v784 = vand.u32 %v783, 4294901760
        %v785 = vsub.f32 %v783, %v784
        %v786 = vand.u32 %v785, 4294901760
        %787 = vmatpush.msra.mxu0 %v786
        %v788 = vand.u32 %v270, 4294901760
        %v789 = vsub.f32 %v270, %v788
        %v790 = vand.u32 %v789, 4294901760
        %v791 = vsub.f32 %v789, %v790
        %v792 = vand.u32 %v791, 4294901760
        %793 = vmatpush.msra.mxu0 %v792
        %v794 = vand.u32 %v269, 4294901760
        %v795 = vsub.f32 %v269, %v794
        %v796 = vand.u32 %v795, 4294901760
        %v797 = vsub.f32 %v795, %v796
        %v798 = vand.u32 %v797, 4294901760
        %799 = vmatpush.msra.mxu0 %v798
        %v800 = vand.u32 %v268, 4294901760
        %v801 = vsub.f32 %v268, %v800
        %v802 = vand.u32 %v801, 4294901760
        %v803 = vsub.f32 %v801, %v802
        %v804 = vand.u32 %v803, 4294901760
        %805 = vmatpush.msra.mxu0 %v804
        %v806 = vand.u32 %v267, 4294901760
        %v807 = vsub.f32 %v267, %v806
        %v808 = vand.u32 %v807, 4294901760
        %v809 = vsub.f32 %v807, %v808
        %v810 = vand.u32 %v809, 4294901760
        %811 = vmatpush.msra.mxu0 %v810
        %v812 = vand.u32 %v247, 4294901760
        %813 = vmatmul.f32.gmra.mxu0 %v812
        %v814 = vpop.f32.mrf.mxu0
        %v815 = vadd.f32 %v714, %v814
        %816 = vdwg.mxu0
        %v817 = vand.u32 %v282, 4294901760
        %v818 = vsub.f32 %v282, %v817
        %819 = vmatpush.msra.mxu0 %v818
        %v820 = vand.u32 %v281, 4294901760
        %v821 = vsub.f32 %v281, %v820
        %822 = vmatpush.msra.mxu0 %v821
        %v823 = vand.u32 %v280, 4294901760
        %v824 = vsub.f32 %v280, %v823
        %825 = vmatpush.msra.mxu0 %v824
        %v826 = vand.u32 %v279, 4294901760
        %v827 = vsub.f32 %v279, %v826
        %828 = vmatpush.msra.mxu0 %v827
        %v829 = vand.u32 %v278, 4294901760
        %v830 = vsub.f32 %v278, %v829
        %831 = vmatpush.msra.mxu0 %v830
        %v832 = vand.u32 %v277, 4294901760
        %v833 = vsub.f32 %v277, %v832
        %834 = vmatpush.msra.mxu0 %v833
        %v835 = vand.u32 %v276, 4294901760
        %v836 = vsub.f32 %v276, %v835
        %837 = vmatpush.msra.mxu0 %v836
        %v838 = vand.u32 %v275, 4294901760
        %v839 = vsub.f32 %v275, %v838
        %840 = vmatpush.msra.mxu0 %v839
        %v841 = vand.u32 %v274, 4294901760
        %v842 = vsub.f32 %v274, %v841
        %843 = vmatpush.msra.mxu0 %v842
        %v844 = vand.u32 %v273, 4294901760
        %v845 = vsub.f32 %v273, %v844
        %846 = vmatpush.msra.mxu0 %v845
        %v847 = vand.u32 %v272, 4294901760
        %v848 = vsub.f32 %v272, %v847
        %849 = vmatpush.msra.mxu0 %v848
        %v850 = vand.u32 %v271, 4294901760
        %v851 = vsub.f32 %v271, %v850
        %852 = vmatpush.msra.mxu0 %v851
        %v853 = vand.u32 %v270, 4294901760
        %v854 = vsub.f32 %v270, %v853
        %855 = vmatpush.msra.mxu0 %v854
        %v856 = vand.u32 %v269, 4294901760
        %v857 = vsub.f32 %v269, %v856
        %858 = vmatpush.msra.mxu0 %v857
        %v859 = vand.u32 %v268, 4294901760
        %v860 = vsub.f32 %v268, %v859
        %861 = vmatpush.msra.mxu0 %v860
        %v862 = vand.u32 %v267, 4294901760
        %v863 = vsub.f32 %v267, %v862
        %864 = vmatpush.msra.mxu0 %v863
        %v865 = vand.u32 %v247, 4294901760
        %v866 = vsub.f32 %v247, %v865
        %867 = vmatmul.f32.gmra.mxu0 %v866
        %v868 = vpop.f32.mrf.mxu0
        %v869 = vadd.f32 %v815, %v868
        %870 = vdwg.mxu0
        %v871 = vand.u32 %v282, 4294901760
        %872 = vmatpush.msra.mxu0 %v871
        %v873 = vand.u32 %v281, 4294901760
        %874 = vmatpush.msra.mxu0 %v873
        %v875 = vand.u32 %v280, 4294901760
        %876 = vmatpush.msra.mxu0 %v875
        %v877 = vand.u32 %v279, 4294901760
        %878 = vmatpush.msra.mxu0 %v877
        %v879 = vand.u32 %v278, 4294901760
        %880 = vmatpush.msra.mxu0 %v879
        %v881 = vand.u32 %v277, 4294901760
        %882 = vmatpush.msra.mxu0 %v881
        %v883 = vand.u32 %v276, 4294901760
        %884 = vmatpush.msra.mxu0 %v883
        %v885 = vand.u32 %v275, 4294901760
        %886 = vmatpush.msra.mxu0 %v885
        %v887 = vand.u32 %v274, 4294901760
        %888 = vmatpush.msra.mxu0 %v887
        %v889 = vand.u32 %v273, 4294901760
        %890 = vmatpush.msra.mxu0 %v889
        %v891 = vand.u32 %v272, 4294901760
        %892 = vmatpush.msra.mxu0 %v891
        %v893 = vand.u32 %v271, 4294901760
        %894 = vmatpush.msra.mxu0 %v893
        %v895 = vand.u32 %v270, 4294901760
        %896 = vmatpush.msra.mxu0 %v895
        %v897 = vand.u32 %v269, 4294901760
        %898 = vmatpush.msra.mxu0 %v897
        %v899 = vand.u32 %v268, 4294901760
        %900 = vmatpush.msra.mxu0 %v899
        %v901 = vand.u32 %v267, 4294901760
        %902 = vmatpush.msra.mxu0 %v901
        %v903 = vand.u32 %v247, 4294901760
        %v904 = vsub.f32 %v247, %v903
        %v905 = vand.u32 %v904, 4294901760
        %906 = vmatmul.f32.gmra.mxu0 %v905
        %v907 = vpop.f32.mrf.mxu0
        %v908 = vadd.f32 %v869, %v907
        %909 = vdwg.mxu0
        %v910 = vand.u32 %v282, 4294901760
        %v911 = vsub.f32 %v282, %v910
        %v912 = vand.u32 %v911, 4294901760
        %913 = vmatpush.msra.mxu0 %v912
        %v914 = vand.u32 %v281, 4294901760
        %v915 = vsub.f32 %v281, %v914
        %v916 = vand.u32 %v915, 4294901760
        %917 = vmatpush.msra.mxu0 %v916
        %v918 = vand.u32 %v280, 4294901760
        %v919 = vsub.f32 %v280, %v918
        %v920 = vand.u32 %v919, 4294901760
        %921 = vmatpush.msra.mxu0 %v920
        %v922 = vand.u32 %v279, 4294901760
        %v923 = vsub.f32 %v279, %v922
        %v924 = vand.u32 %v923, 4294901760
        %925 = vmatpush.msra.mxu0 %v924
        %v926 = vand.u32 %v278, 4294901760
        %v927 = vsub.f32 %v278, %v926
        %v928 = vand.u32 %v927, 4294901760
        %929 = vmatpush.msra.mxu0 %v928
        %v930 = vand.u32 %v277, 4294901760
        %v931 = vsub.f32 %v277, %v930
        %v932 = vand.u32 %v931, 4294901760
        %933 = vmatpush.msra.mxu0 %v932
        %v934 = vand.u32 %v276, 4294901760
        %v935 = vsub.f32 %v276, %v934
        %v936 = vand.u32 %v935, 4294901760
        %937 = vmatpush.msra.mxu0 %v936
        %v938 = vand.u32 %v275, 4294901760
        %v939 = vsub.f32 %v275, %v938
        %v940 = vand.u32 %v939, 4294901760
        %941 = vmatpush.msra.mxu0 %v940
        %v942 = vand.u32 %v274, 4294901760
        %v943 = vsub.f32 %v274, %v942
        %v944 = vand.u32 %v943, 4294901760
        %945 = vmatpush.msra.mxu0 %v944
        %v946 = vand.u32 %v273, 4294901760
        %v947 = vsub.f32 %v273, %v946
        %v948 = vand.u32 %v947, 4294901760
        %949 = vmatpush.msra.mxu0 %v948
        %v950 = vand.u32 %v272, 4294901760
        %v951 = vsub.f32 %v272, %v950
        %v952 = vand.u32 %v951, 4294901760
        %953 = vmatpush.msra.mxu0 %v952
        %v954 = vand.u32 %v271, 4294901760
        %v955 = vsub.f32 %v271, %v954
        %v956 = vand.u32 %v955, 4294901760
        %957 = vmatpush.msra.mxu0 %v956
        %v958 = vand.u32 %v270, 4294901760
        %v959 = vsub.f32 %v270, %v958
        %v960 = vand.u32 %v959, 4294901760
        %961 = vmatpush.msra.mxu0 %v960
        %v962 = vand.u32 %v269, 4294901760
        %v963 = vsub.f32 %v269, %v962
        %v964 = vand.u32 %v963, 4294901760
        %965 = vmatpush.msra.mxu0 %v964
        %v966 = vand.u32 %v268, 4294901760
        %v967 = vsub.f32 %v268, %v966
        %v968 = vand.u32 %v967, 4294901760
        %969 = vmatpush.msra.mxu0 %v968
        %v970 = vand.u32 %v267, 4294901760
        %v971 = vsub.f32 %v267, %v970
        %v972 = vand.u32 %v971, 4294901760
        %973 = vmatpush.msra.mxu0 %v972
        %v974 = vand.u32 %v247, 4294901760
        %975 = vmatmul.f32.gmra.mxu0 %v974
        %v976 = vpop.f32.mrf.mxu0
        %v977 = vadd.f32 %v908, %v976
        %978 = vdwg.mxu0
        %v979 = vand.u32 %v282, 4294901760
        %980 = vmatpush.msra.mxu0 %v979
        %v981 = vand.u32 %v281, 4294901760
        %982 = vmatpush.msra.mxu0 %v981
        %v983 = vand.u32 %v280, 4294901760
        %984 = vmatpush.msra.mxu0 %v983
        %v985 = vand.u32 %v279, 4294901760
        %986 = vmatpush.msra.mxu0 %v985
        %v987 = vand.u32 %v278, 4294901760
        %988 = vmatpush.msra.mxu0 %v987
        %v989 = vand.u32 %v277, 4294901760
        %990 = vmatpush.msra.mxu0 %v989
        %v991 = vand.u32 %v276, 4294901760
        %992 = vmatpush.msra.mxu0 %v991
        %v993 = vand.u32 %v275, 4294901760
        %994 = vmatpush.msra.mxu0 %v993
        %v995 = vand.u32 %v274, 4294901760
        %996 = vmatpush.msra.mxu0 %v995
        %v997 = vand.u32 %v273, 4294901760
        %998 = vmatpush.msra.mxu0 %v997
        %v999 = vand.u32 %v272, 4294901760
        %1000 = vmatpush.msra.mxu0 %v999
        %v1001 = vand.u32 %v271, 4294901760
        %1002 = vmatpush.msra.mxu0 %v1001
        %v1003 = vand.u32 %v270, 4294901760
        %1004 = vmatpush.msra.mxu0 %v1003
        %v1005 = vand.u32 %v269, 4294901760
        %1006 = vmatpush.msra.mxu0 %v1005
        %v1007 = vand.u32 %v268, 4294901760
        %1008 = vmatpush.msra.mxu0 %v1007
        %v1009 = vand.u32 %v267, 4294901760
        %1010 = vmatpush.msra.mxu0 %v1009
        %v1011 = vand.u32 %v247, 4294901760
        %1012 = vmatmul.f32.gmra.mxu0 %v1011
        %v1013 = vpop.f32.mrf.mxu0
        %v1014 = vadd.f32 %v977, %v1013
        %1015 = vdwg.mxu0
        %v1016 = vand.u32 %v298, 4294901760
        %1017 = vmatpush.msra.mxu0 %v1016
        %v1018 = vand.u32 %v297, 4294901760
        %1019 = vmatpush.msra.mxu0 %v1018
        %v1020 = vand.u32 %v296, 4294901760
        %1021 = vmatpush.msra.mxu0 %v1020
        %v1022 = vand.u32 %v295, 4294901760
        %1023 = vmatpush.msra.mxu0 %v1022
        %v1024 = vand.u32 %v294, 4294901760
        %1025 = vmatpush.msra.mxu0 %v1024
        %v1026 = vand.u32 %v293, 4294901760
        %1027 = vmatpush.msra.mxu0 %v1026
        %v1028 = vand.u32 %v292, 4294901760
        %1029 = vmatpush.msra.mxu0 %v1028
        %v1030 = vand.u32 %v291, 4294901760
        %1031 = vmatpush.msra.mxu0 %v1030
        %v1032 = vand.u32 %v290, 4294901760
        %1033 = vmatpush.msra.mxu0 %v1032
        %v1034 = vand.u32 %v289, 4294901760
        %1035 = vmatpush.msra.mxu0 %v1034
        %v1036 = vand.u32 %v288, 4294901760
        %1037 = vmatpush.msra.mxu0 %v1036
        %v1038 = vand.u32 %v287, 4294901760
        %1039 = vmatpush.msra.mxu0 %v1038
        %v1040 = vand.u32 %v286, 4294901760
        %1041 = vmatpush.msra.mxu0 %v1040
        %v1042 = vand.u32 %v285, 4294901760
        %1043 = vmatpush.msra.mxu0 %v1042
        %v1044 = vand.u32 %v284, 4294901760
        %1045 = vmatpush.msra.mxu0 %v1044
        %v1046 = vand.u32 %v283, 4294901760
        %1047 = vmatpush.msra.mxu0 %v1046
        %v1048 = vand.u32 %v248, 4294901760
        %v1049 = vsub.f32 %v248, %v1048
        %v1050 = vand.u32 %v1049, 4294901760
        %v1051 = vsub.f32 %v1049, %v1050
        %v1052 = vand.u32 %v1051, 4294901760
        %1053 = vmatmul.f32.gmra.mxu0 %v1052
        %v1054 = vpop.f32.mrf.mxu0
        %v1055 = vadd.f32 %v1014, %v1054
        %1056 = vdwg.mxu0
        %v1057 = vand.u32 %v298, 4294901760
        %v1058 = vsub.f32 %v298, %v1057
        %v1059 = vand.u32 %v1058, 4294901760
        %v1060 = vsub.f32 %v1058, %v1059
        %v1061 = vand.u32 %v1060, 4294901760
        %1062 = vmatpush.msra.mxu0 %v1061
        %v1063 = vand.u32 %v297, 4294901760
        %v1064 = vsub.f32 %v297, %v1063
        %v1065 = vand.u32 %v1064, 4294901760
        %v1066 = vsub.f32 %v1064, %v1065
        %v1067 = vand.u32 %v1066, 4294901760
        %1068 = vmatpush.msra.mxu0 %v1067
        %v1069 = vand.u32 %v296, 4294901760
        %v1070 = vsub.f32 %v296, %v1069
        %v1071 = vand.u32 %v1070, 4294901760
        %v1072 = vsub.f32 %v1070, %v1071
        %v1073 = vand.u32 %v1072, 4294901760
        %1074 = vmatpush.msra.mxu0 %v1073
        %v1075 = vand.u32 %v295, 4294901760
        %v1076 = vsub.f32 %v295, %v1075
        %v1077 = vand.u32 %v1076, 4294901760
        %v1078 = vsub.f32 %v1076, %v1077
        %v1079 = vand.u32 %v1078, 4294901760
        %1080 = vmatpush.msra.mxu0 %v1079
        %v1081 = vand.u32 %v294, 4294901760
        %v1082 = vsub.f32 %v294, %v1081
        %v1083 = vand.u32 %v1082, 4294901760
        %v1084 = vsub.f32 %v1082, %v1083
        %v1085 = vand.u32 %v1084, 4294901760
        %1086 = vmatpush.msra.mxu0 %v1085
        %v1087 = vand.u32 %v293, 4294901760
        %v1088 = vsub.f32 %v293, %v1087
        %v1089 = vand.u32 %v1088, 4294901760
        %v1090 = vsub.f32 %v1088, %v1089
        %v1091 = vand.u32 %v1090, 4294901760
        %1092 = vmatpush.msra.mxu0 %v1091
        %v1093 = vand.u32 %v292, 4294901760
        %v1094 = vsub.f32 %v292, %v1093
        %v1095 = vand.u32 %v1094, 4294901760
        %v1096 = vsub.f32 %v1094, %v1095
        %v1097 = vand.u32 %v1096, 4294901760
        %1098 = vmatpush.msra.mxu0 %v1097
        %v1099 = vand.u32 %v291, 4294901760
        %v1100 = vsub.f32 %v291, %v1099
        %v1101 = vand.u32 %v1100, 4294901760
        %v1102 = vsub.f32 %v1100, %v1101
        %v1103 = vand.u32 %v1102, 4294901760
        %1104 = vmatpush.msra.mxu0 %v1103
        %v1105 = vand.u32 %v290, 4294901760
        %v1106 = vsub.f32 %v290, %v1105
        %v1107 = vand.u32 %v1106, 4294901760
        %v1108 = vsub.f32 %v1106, %v1107
        %v1109 = vand.u32 %v1108, 4294901760
        %1110 = vmatpush.msra.mxu0 %v1109
        %v1111 = vand.u32 %v289, 4294901760
        %v1112 = vsub.f32 %v289, %v1111
        %v1113 = vand.u32 %v1112, 4294901760
        %v1114 = vsub.f32 %v1112, %v1113
        %v1115 = vand.u32 %v1114, 4294901760
        %1116 = vmatpush.msra.mxu0 %v1115
        %v1117 = vand.u32 %v288, 4294901760
        %v1118 = vsub.f32 %v288, %v1117
        %v1119 = vand.u32 %v1118, 4294901760
        %v1120 = vsub.f32 %v1118, %v1119
        %v1121 = vand.u32 %v1120, 4294901760
        %1122 = vmatpush.msra.mxu0 %v1121
        %v1123 = vand.u32 %v287, 4294901760
        %v1124 = vsub.f32 %v287, %v1123
        %v1125 = vand.u32 %v1124, 4294901760
        %v1126 = vsub.f32 %v1124, %v1125
        %v1127 = vand.u32 %v1126, 4294901760
        %1128 = vmatpush.msra.mxu0 %v1127
        %v1129 = vand.u32 %v286, 4294901760
        %v1130 = vsub.f32 %v286, %v1129
        %v1131 = vand.u32 %v1130, 4294901760
        %v1132 = vsub.f32 %v1130, %v1131
        %v1133 = vand.u32 %v1132, 4294901760
        %1134 = vmatpush.msra.mxu0 %v1133
        %v1135 = vand.u32 %v285, 4294901760
        %v1136 = vsub.f32 %v285, %v1135
        %v1137 = vand.u32 %v1136, 4294901760
        %v1138 = vsub.f32 %v1136, %v1137
        %v1139 = vand.u32 %v1138, 4294901760
        %1140 = vmatpush.msra.mxu0 %v1139
        %v1141 = vand.u32 %v284, 4294901760
        %v1142 = vsub.f32 %v284, %v1141
        %v1143 = vand.u32 %v1142, 4294901760
        %v1144 = vsub.f32 %v1142, %v1143
        %v1145 = vand.u32 %v1144, 4294901760
        %1146 = vmatpush.msra.mxu0 %v1145
        %v1147 = vand.u32 %v283, 4294901760
        %v1148 = vsub.f32 %v283, %v1147
        %v1149 = vand.u32 %v1148, 4294901760
        %v1150 = vsub.f32 %v1148, %v1149
        %v1151 = vand.u32 %v1150, 4294901760
        %1152 = vmatpush.msra.mxu0 %v1151
        %v1153 = vand.u32 %v248, 4294901760
        %1154 = vmatmul.f32.gmra.mxu0 %v1153
        %v1155 = vpop.f32.mrf.mxu0
        %v1156 = vadd.f32 %v1055, %v1155
        %1157 = vdwg.mxu0
        %v1158 = vand.u32 %v298, 4294901760
        %v1159 = vsub.f32 %v298, %v1158
        %1160 = vmatpush.msra.mxu0 %v1159
        %v1161 = vand.u32 %v297, 4294901760
        %v1162 = vsub.f32 %v297, %v1161
        %1163 = vmatpush.msra.mxu0 %v1162
        %v1164 = vand.u32 %v296, 4294901760
        %v1165 = vsub.f32 %v296, %v1164
        %1166 = vmatpush.msra.mxu0 %v1165
        %v1167 = vand.u32 %v295, 4294901760
        %v1168 = vsub.f32 %v295, %v1167
        %1169 = vmatpush.msra.mxu0 %v1168
        %v1170 = vand.u32 %v294, 4294901760
        %v1171 = vsub.f32 %v294, %v1170
        %1172 = vmatpush.msra.mxu0 %v1171
        %v1173 = vand.u32 %v293, 4294901760
        %v1174 = vsub.f32 %v293, %v1173
        %1175 = vmatpush.msra.mxu0 %v1174
        %v1176 = vand.u32 %v292, 4294901760
        %v1177 = vsub.f32 %v292, %v1176
        %1178 = vmatpush.msra.mxu0 %v1177
        %v1179 = vand.u32 %v291, 4294901760
        %v1180 = vsub.f32 %v291, %v1179
        %1181 = vmatpush.msra.mxu0 %v1180
        %v1182 = vand.u32 %v290, 4294901760
        %v1183 = vsub.f32 %v290, %v1182
        %1184 = vmatpush.msra.mxu0 %v1183
        %v1185 = vand.u32 %v289, 4294901760
        %v1186 = vsub.f32 %v289, %v1185
        %1187 = vmatpush.msra.mxu0 %v1186
        %v1188 = vand.u32 %v288, 4294901760
        %v1189 = vsub.f32 %v288, %v1188
        %1190 = vmatpush.msra.mxu0 %v1189
        %v1191 = vand.u32 %v287, 4294901760
        %v1192 = vsub.f32 %v287, %v1191
        %1193 = vmatpush.msra.mxu0 %v1192
        %v1194 = vand.u32 %v286, 4294901760
        %v1195 = vsub.f32 %v286, %v1194
        %1196 = vmatpush.msra.mxu0 %v1195
        %v1197 = vand.u32 %v285, 4294901760
        %v1198 = vsub.f32 %v285, %v1197
        %1199 = vmatpush.msra.mxu0 %v1198
        %v1200 = vand.u32 %v284, 4294901760
        %v1201 = vsub.f32 %v284, %v1200
        %1202 = vmatpush.msra.mxu0 %v1201
        %v1203 = vand.u32 %v283, 4294901760
        %v1204 = vsub.f32 %v283, %v1203
        %1205 = vmatpush.msra.mxu0 %v1204
        %v1206 = vand.u32 %v248, 4294901760
        %v1207 = vsub.f32 %v248, %v1206
        %1208 = vmatmul.f32.gmra.mxu0 %v1207
        %v1209 = vpop.f32.mrf.mxu0
        %v1210 = vadd.f32 %v1156, %v1209
        %1211 = vdwg.mxu0
        %v1212 = vand.u32 %v298, 4294901760
        %1213 = vmatpush.msra.mxu0 %v1212
        %v1214 = vand.u32 %v297, 4294901760
        %1215 = vmatpush.msra.mxu0 %v1214
        %v1216 = vand.u32 %v296, 4294901760
        %1217 = vmatpush.msra.mxu0 %v1216
        %v1218 = vand.u32 %v295, 4294901760
        %1219 = vmatpush.msra.mxu0 %v1218
        %v1220 = vand.u32 %v294, 4294901760
        %1221 = vmatpush.msra.mxu0 %v1220
        %v1222 = vand.u32 %v293, 4294901760
        %1223 = vmatpush.msra.mxu0 %v1222
        %v1224 = vand.u32 %v292, 4294901760
        %1225 = vmatpush.msra.mxu0 %v1224
        %v1226 = vand.u32 %v291, 4294901760
        %1227 = vmatpush.msra.mxu0 %v1226
        %v1228 = vand.u32 %v290, 4294901760
        %1229 = vmatpush.msra.mxu0 %v1228
        %v1230 = vand.u32 %v289, 4294901760
        %1231 = vmatpush.msra.mxu0 %v1230
        %v1232 = vand.u32 %v288, 4294901760
        %1233 = vmatpush.msra.mxu0 %v1232
        %v1234 = vand.u32 %v287, 4294901760
        %1235 = vmatpush.msra.mxu0 %v1234
        %v1236 = vand.u32 %v286, 4294901760
        %1237 = vmatpush.msra.mxu0 %v1236
        %v1238 = vand.u32 %v285, 4294901760
        %1239 = vmatpush.msra.mxu0 %v1238
        %v1240 = vand.u32 %v284, 4294901760
        %1241 = vmatpush.msra.mxu0 %v1240
        %v1242 = vand.u32 %v283, 4294901760
        %1243 = vmatpush.msra.mxu0 %v1242
        %v1244 = vand.u32 %v248, 4294901760
        %v1245 = vsub.f32 %v248, %v1244
        %v1246 = vand.u32 %v1245, 4294901760
        %1247 = vmatmul.f32.gmra.mxu0 %v1246
        %v1248 = vpop.f32.mrf.mxu0
        %v1249 = vadd.f32 %v1210, %v1248
        %1250 = vdwg.mxu0
        %v1251 = vand.u32 %v298, 4294901760
        %v1252 = vsub.f32 %v298, %v1251
        %v1253 = vand.u32 %v1252, 4294901760
        %1254 = vmatpush.msra.mxu0 %v1253
        %v1255 = vand.u32 %v297, 4294901760
        %v1256 = vsub.f32 %v297, %v1255
        %v1257 = vand.u32 %v1256, 4294901760
        %1258 = vmatpush.msra.mxu0 %v1257
        %v1259 = vand.u32 %v296, 4294901760
        %v1260 = vsub.f32 %v296, %v1259
        %v1261 = vand.u32 %v1260, 4294901760
        %1262 = vmatpush.msra.mxu0 %v1261
        %v1263 = vand.u32 %v295, 4294901760
        %v1264 = vsub.f32 %v295, %v1263
        %v1265 = vand.u32 %v1264, 4294901760
        %1266 = vmatpush.msra.mxu0 %v1265
        %v1267 = vand.u32 %v294, 4294901760
        %v1268 = vsub.f32 %v294, %v1267
        %v1269 = vand.u32 %v1268, 4294901760
        %1270 = vmatpush.msra.mxu0 %v1269
        %v1271 = vand.u32 %v293, 4294901760
        %v1272 = vsub.f32 %v293, %v1271
        %v1273 = vand.u32 %v1272, 4294901760
        %1274 = vmatpush.msra.mxu0 %v1273
        %v1275 = vand.u32 %v292, 4294901760
        %v1276 = vsub.f32 %v292, %v1275
        %v1277 = vand.u32 %v1276, 4294901760
        %1278 = vmatpush.msra.mxu0 %v1277
        %v1279 = vand.u32 %v291, 4294901760
        %v1280 = vsub.f32 %v291, %v1279
        %v1281 = vand.u32 %v1280, 4294901760
        %1282 = vmatpush.msra.mxu0 %v1281
        %v1283 = vand.u32 %v290, 4294901760
        %v1284 = vsub.f32 %v290, %v1283
        %v1285 = vand.u32 %v1284, 4294901760
        %1286 = vmatpush.msra.mxu0 %v1285
        %v1287 = vand.u32 %v289, 4294901760
        %v1288 = vsub.f32 %v289, %v1287
        %v1289 = vand.u32 %v1288, 4294901760
        %1290 = vmatpush.msra.mxu0 %v1289
        %v1291 = vand.u32 %v288, 4294901760
        %v1292 = vsub.f32 %v288, %v1291
        %v1293 = vand.u32 %v1292, 4294901760
        %1294 = vmatpush.msra.mxu0 %v1293
        %v1295 = vand.u32 %v287, 4294901760
        %v1296 = vsub.f32 %v287, %v1295
        %v1297 = vand.u32 %v1296, 4294901760
        %1298 = vmatpush.msra.mxu0 %v1297
        %v1299 = vand.u32 %v286, 4294901760
        %v1300 = vsub.f32 %v286, %v1299
        %v1301 = vand.u32 %v1300, 4294901760
        %1302 = vmatpush.msra.mxu0 %v1301
        %v1303 = vand.u32 %v285, 4294901760
        %v1304 = vsub.f32 %v285, %v1303
        %v1305 = vand.u32 %v1304, 4294901760
        %1306 = vmatpush.msra.mxu0 %v1305
        %v1307 = vand.u32 %v284, 4294901760
        %v1308 = vsub.f32 %v284, %v1307
        %v1309 = vand.u32 %v1308, 4294901760
        %1310 = vmatpush.msra.mxu0 %v1309
        %v1311 = vand.u32 %v283, 4294901760
        %v1312 = vsub.f32 %v283, %v1311
        %v1313 = vand.u32 %v1312, 4294901760
        %1314 = vmatpush.msra.mxu0 %v1313
        %v1315 = vand.u32 %v248, 4294901760
        %1316 = vmatmul.f32.gmra.mxu0 %v1315
        %v1317 = vpop.f32.mrf.mxu0
        %v1318 = vadd.f32 %v1249, %v1317
        %1319 = vdwg.mxu0
        %v1320 = vand.u32 %v298, 4294901760
        %1321 = vmatpush.msra.mxu0 %v1320
        %v1322 = vand.u32 %v297, 4294901760
        %1323 = vmatpush.msra.mxu0 %v1322
        %v1324 = vand.u32 %v296, 4294901760
        %1325 = vmatpush.msra.mxu0 %v1324
        %v1326 = vand.u32 %v295, 4294901760
        %1327 = vmatpush.msra.mxu0 %v1326
        %v1328 = vand.u32 %v294, 4294901760
        %1329 = vmatpush.msra.mxu0 %v1328
        %v1330 = vand.u32 %v293, 4294901760
        %1331 = vmatpush.msra.mxu0 %v1330
        %v1332 = vand.u32 %v292, 4294901760
        %1333 = vmatpush.msra.mxu0 %v1332
        %v1334 = vand.u32 %v291, 4294901760
        %1335 = vmatpush.msra.mxu0 %v1334
        %v1336 = vand.u32 %v290, 4294901760
        %1337 = vmatpush.msra.mxu0 %v1336
        %v1338 = vand.u32 %v289, 4294901760
        %1339 = vmatpush.msra.mxu0 %v1338
        %v1340 = vand.u32 %v288, 4294901760
        %1341 = vmatpush.msra.mxu0 %v1340
        %v1342 = vand.u32 %v287, 4294901760
        %1343 = vmatpush.msra.mxu0 %v1342
        %v1344 = vand.u32 %v286, 4294901760
        %1345 = vmatpush.msra.mxu0 %v1344
        %v1346 = vand.u32 %v285, 4294901760
        %1347 = vmatpush.msra.mxu0 %v1346
        %v1348 = vand.u32 %v284, 4294901760
        %1349 = vmatpush.msra.mxu0 %v1348
        %v1350 = vand.u32 %v283, 4294901760
        %1351 = vmatpush.msra.mxu0 %v1350
        %v1352 = vand.u32 %v248, 4294901760
        %1353 = vmatmul.f32.gmra.mxu0 %v1352
        %v1354 = vpop.f32.mrf.mxu0
        %v1355 = vadd.f32 %v1318, %v1354
        %1356 = vdwg.mxu0
        %v1357 = vand.u32 %v314, 4294901760
        %1358 = vmatpush.msra.mxu0 %v1357
        %v1359 = vand.u32 %v313, 4294901760
        %1360 = vmatpush.msra.mxu0 %v1359
        %v1361 = vand.u32 %v312, 4294901760
        %1362 = vmatpush.msra.mxu0 %v1361
        %v1363 = vand.u32 %v311, 4294901760
        %1364 = vmatpush.msra.mxu0 %v1363
        %v1365 = vand.u32 %v310, 4294901760
        %1366 = vmatpush.msra.mxu0 %v1365
        %v1367 = vand.u32 %v309, 4294901760
        %1368 = vmatpush.msra.mxu0 %v1367
        %v1369 = vand.u32 %v308, 4294901760
        %1370 = vmatpush.msra.mxu0 %v1369
        %v1371 = vand.u32 %v307, 4294901760
        %1372 = vmatpush.msra.mxu0 %v1371
        %v1373 = vand.u32 %v306, 4294901760
        %1374 = vmatpush.msra.mxu0 %v1373
        %v1375 = vand.u32 %v305, 4294901760
        %1376 = vmatpush.msra.mxu0 %v1375
        %v1377 = vand.u32 %v304, 4294901760
        %1378 = vmatpush.msra.mxu0 %v1377
        %v1379 = vand.u32 %v303, 4294901760
        %1380 = vmatpush.msra.mxu0 %v1379
        %v1381 = vand.u32 %v302, 4294901760
        %1382 = vmatpush.msra.mxu0 %v1381
        %v1383 = vand.u32 %v301, 4294901760
        %1384 = vmatpush.msra.mxu0 %v1383
        %v1385 = vand.u32 %v300, 4294901760
        %1386 = vmatpush.msra.mxu0 %v1385
        %v1387 = vand.u32 %v299, 4294901760
        %1388 = vmatpush.msra.mxu0 %v1387
        %v1389 = vand.u32 %v249, 4294901760
        %v1390 = vsub.f32 %v249, %v1389
        %v1391 = vand.u32 %v1390, 4294901760
        %v1392 = vsub.f32 %v1390, %v1391
        %v1393 = vand.u32 %v1392, 4294901760
        %1394 = vmatmul.f32.gmra.mxu0 %v1393
        %v1395 = vpop.f32.mrf.mxu0
        %v1396 = vadd.f32 %v1355, %v1395
        %1397 = vdwg.mxu0
        %v1398 = vand.u32 %v314, 4294901760
        %v1399 = vsub.f32 %v314, %v1398
        %v1400 = vand.u32 %v1399, 4294901760
        %v1401 = vsub.f32 %v1399, %v1400
        %v1402 = vand.u32 %v1401, 4294901760
        %1403 = vmatpush.msra.mxu0 %v1402
        %v1404 = vand.u32 %v313, 4294901760
        %v1405 = vsub.f32 %v313, %v1404
        %v1406 = vand.u32 %v1405, 4294901760
        %v1407 = vsub.f32 %v1405, %v1406
        %v1408 = vand.u32 %v1407, 4294901760
        %1409 = vmatpush.msra.mxu0 %v1408
        %v1410 = vand.u32 %v312, 4294901760
        %v1411 = vsub.f32 %v312, %v1410
        %v1412 = vand.u32 %v1411, 4294901760
        %v1413 = vsub.f32 %v1411, %v1412
        %v1414 = vand.u32 %v1413, 4294901760
        %1415 = vmatpush.msra.mxu0 %v1414
        %v1416 = vand.u32 %v311, 4294901760
        %v1417 = vsub.f32 %v311, %v1416
        %v1418 = vand.u32 %v1417, 4294901760
        %v1419 = vsub.f32 %v1417, %v1418
        %v1420 = vand.u32 %v1419, 4294901760
        %1421 = vmatpush.msra.mxu0 %v1420
        %v1422 = vand.u32 %v310, 4294901760
        %v1423 = vsub.f32 %v310, %v1422
        %v1424 = vand.u32 %v1423, 4294901760
        %v1425 = vsub.f32 %v1423, %v1424
        %v1426 = vand.u32 %v1425, 4294901760
        %1427 = vmatpush.msra.mxu0 %v1426
        %v1428 = vand.u32 %v309, 4294901760
        %v1429 = vsub.f32 %v309, %v1428
        %v1430 = vand.u32 %v1429, 4294901760
        %v1431 = vsub.f32 %v1429, %v1430
        %v1432 = vand.u32 %v1431, 4294901760
        %1433 = vmatpush.msra.mxu0 %v1432
        %v1434 = vand.u32 %v308, 4294901760
        %v1435 = vsub.f32 %v308, %v1434
        %v1436 = vand.u32 %v1435, 4294901760
        %v1437 = vsub.f32 %v1435, %v1436
        %v1438 = vand.u32 %v1437, 4294901760
        %1439 = vmatpush.msra.mxu0 %v1438
        %v1440 = vand.u32 %v307, 4294901760
        %v1441 = vsub.f32 %v307, %v1440
        %v1442 = vand.u32 %v1441, 4294901760
        %v1443 = vsub.f32 %v1441, %v1442
        %v1444 = vand.u32 %v1443, 4294901760
        %1445 = vmatpush.msra.mxu0 %v1444
        %v1446 = vand.u32 %v306, 4294901760
        %v1447 = vsub.f32 %v306, %v1446
        %v1448 = vand.u32 %v1447, 4294901760
        %v1449 = vsub.f32 %v1447, %v1448
        %v1450 = vand.u32 %v1449, 4294901760
        %1451 = vmatpush.msra.mxu0 %v1450
        %v1452 = vand.u32 %v305, 4294901760
        %v1453 = vsub.f32 %v305, %v1452
        %v1454 = vand.u32 %v1453, 4294901760
        %v1455 = vsub.f32 %v1453, %v1454
        %v1456 = vand.u32 %v1455, 4294901760
        %1457 = vmatpush.msra.mxu0 %v1456
        %v1458 = vand.u32 %v304, 4294901760
        %v1459 = vsub.f32 %v304, %v1458
        %v1460 = vand.u32 %v1459, 4294901760
        %v1461 = vsub.f32 %v1459, %v1460
        %v1462 = vand.u32 %v1461, 4294901760
        %1463 = vmatpush.msra.mxu0 %v1462
        %v1464 = vand.u32 %v303, 4294901760
        %v1465 = vsub.f32 %v303, %v1464
        %v1466 = vand.u32 %v1465, 4294901760
        %v1467 = vsub.f32 %v1465, %v1466
        %v1468 = vand.u32 %v1467, 4294901760
        %1469 = vmatpush.msra.mxu0 %v1468
        %v1470 = vand.u32 %v302, 4294901760
        %v1471 = vsub.f32 %v302, %v1470
        %v1472 = vand.u32 %v1471, 4294901760
        %v1473 = vsub.f32 %v1471, %v1472
        %v1474 = vand.u32 %v1473, 4294901760
        %1475 = vmatpush.msra.mxu0 %v1474
        %v1476 = vand.u32 %v301, 4294901760
        %v1477 = vsub.f32 %v301, %v1476
        %v1478 = vand.u32 %v1477, 4294901760
        %v1479 = vsub.f32 %v1477, %v1478
        %v1480 = vand.u32 %v1479, 4294901760
        %1481 = vmatpush.msra.mxu0 %v1480
        %v1482 = vand.u32 %v300, 4294901760
        %v1483 = vsub.f32 %v300, %v1482
        %v1484 = vand.u32 %v1483, 4294901760
        %v1485 = vsub.f32 %v1483, %v1484
        %v1486 = vand.u32 %v1485, 4294901760
        %1487 = vmatpush.msra.mxu0 %v1486
        %v1488 = vand.u32 %v299, 4294901760
        %v1489 = vsub.f32 %v299, %v1488
        %v1490 = vand.u32 %v1489, 4294901760
        %v1491 = vsub.f32 %v1489, %v1490
        %v1492 = vand.u32 %v1491, 4294901760
        %1493 = vmatpush.msra.mxu0 %v1492
        %v1494 = vand.u32 %v249, 4294901760
        %1495 = vmatmul.f32.gmra.mxu0 %v1494
        %v1496 = vpop.f32.mrf.mxu0
        %v1497 = vadd.f32 %v1396, %v1496
        %1498 = vdwg.mxu0
        %v1499 = vand.u32 %v314, 4294901760
        %v1500 = vsub.f32 %v314, %v1499
        %1501 = vmatpush.msra.mxu0 %v1500
        %v1502 = vand.u32 %v313, 4294901760
        %v1503 = vsub.f32 %v313, %v1502
        %1504 = vmatpush.msra.mxu0 %v1503
        %v1505 = vand.u32 %v312, 4294901760
        %v1506 = vsub.f32 %v312, %v1505
        %1507 = vmatpush.msra.mxu0 %v1506
        %v1508 = vand.u32 %v311, 4294901760
        %v1509 = vsub.f32 %v311, %v1508
        %1510 = vmatpush.msra.mxu0 %v1509
        %v1511 = vand.u32 %v310, 4294901760
        %v1512 = vsub.f32 %v310, %v1511
        %1513 = vmatpush.msra.mxu0 %v1512
        %v1514 = vand.u32 %v309, 4294901760
        %v1515 = vsub.f32 %v309, %v1514
        %1516 = vmatpush.msra.mxu0 %v1515
        %v1517 = vand.u32 %v308, 4294901760
        %v1518 = vsub.f32 %v308, %v1517
        %1519 = vmatpush.msra.mxu0 %v1518
        %v1520 = vand.u32 %v307, 4294901760
        %v1521 = vsub.f32 %v307, %v1520
        %1522 = vmatpush.msra.mxu0 %v1521
        %v1523 = vand.u32 %v306, 4294901760
        %v1524 = vsub.f32 %v306, %v1523
        %1525 = vmatpush.msra.mxu0 %v1524
        %v1526 = vand.u32 %v305, 4294901760
        %v1527 = vsub.f32 %v305, %v1526
        %1528 = vmatpush.msra.mxu0 %v1527
        %v1529 = vand.u32 %v304, 4294901760
        %v1530 = vsub.f32 %v304, %v1529
        %1531 = vmatpush.msra.mxu0 %v1530
        %v1532 = vand.u32 %v303, 4294901760
        %v1533 = vsub.f32 %v303, %v1532
        %1534 = vmatpush.msra.mxu0 %v1533
        %v1535 = vand.u32 %v302, 4294901760
        %v1536 = vsub.f32 %v302, %v1535
        %1537 = vmatpush.msra.mxu0 %v1536
        %v1538 = vand.u32 %v301, 4294901760
        %v1539 = vsub.f32 %v301, %v1538
        %1540 = vmatpush.msra.mxu0 %v1539
        %v1541 = vand.u32 %v300, 4294901760
        %v1542 = vsub.f32 %v300, %v1541
        %1543 = vmatpush.msra.mxu0 %v1542
        %v1544 = vand.u32 %v299, 4294901760
        %v1545 = vsub.f32 %v299, %v1544
        %1546 = vmatpush.msra.mxu0 %v1545
        %v1547 = vand.u32 %v249, 4294901760
        %v1548 = vsub.f32 %v249, %v1547
        %1549 = vmatmul.f32.gmra.mxu0 %v1548
        %v1550 = vpop.f32.mrf.mxu0
        %v1551 = vadd.f32 %v1497, %v1550
        %1552 = vdwg.mxu0
        %v1553 = vand.u32 %v314, 4294901760
        %1554 = vmatpush.msra.mxu0 %v1553
        %v1555 = vand.u32 %v313, 4294901760
        %1556 = vmatpush.msra.mxu0 %v1555
        %v1557 = vand.u32 %v312, 4294901760
        %1558 = vmatpush.msra.mxu0 %v1557
        %v1559 = vand.u32 %v311, 4294901760
        %1560 = vmatpush.msra.mxu0 %v1559
        %v1561 = vand.u32 %v310, 4294901760
        %1562 = vmatpush.msra.mxu0 %v1561
        %v1563 = vand.u32 %v309, 4294901760
        %1564 = vmatpush.msra.mxu0 %v1563
        %v1565 = vand.u32 %v308, 4294901760
        %1566 = vmatpush.msra.mxu0 %v1565
        %v1567 = vand.u32 %v307, 4294901760
        %1568 = vmatpush.msra.mxu0 %v1567
        %v1569 = vand.u32 %v306, 4294901760
        %1570 = vmatpush.msra.mxu0 %v1569
        %v1571 = vand.u32 %v305, 4294901760
        %1572 = vmatpush.msra.mxu0 %v1571
        %v1573 = vand.u32 %v304, 4294901760
        %1574 = vmatpush.msra.mxu0 %v1573
        %v1575 = vand.u32 %v303, 4294901760
        %1576 = vmatpush.msra.mxu0 %v1575
        %v1577 = vand.u32 %v302, 4294901760
        %1578 = vmatpush.msra.mxu0 %v1577
        %v1579 = vand.u32 %v301, 4294901760
        %1580 = vmatpush.msra.mxu0 %v1579
        %v1581 = vand.u32 %v300, 4294901760
        %1582 = vmatpush.msra.mxu0 %v1581
        %v1583 = vand.u32 %v299, 4294901760
        %1584 = vmatpush.msra.mxu0 %v1583
        %v1585 = vand.u32 %v249, 4294901760
        %v1586 = vsub.f32 %v249, %v1585
        %v1587 = vand.u32 %v1586, 4294901760
        %1588 = vmatmul.f32.gmra.mxu0 %v1587
        %v1589 = vpop.f32.mrf.mxu0
        %v1590 = vadd.f32 %v1551, %v1589
        %1591 = vdwg.mxu0
        %v1592 = vand.u32 %v314, 4294901760
        %v1593 = vsub.f32 %v314, %v1592
        %v1594 = vand.u32 %v1593, 4294901760
        %1595 = vmatpush.msra.mxu0 %v1594
        %v1596 = vand.u32 %v313, 4294901760
        %v1597 = vsub.f32 %v313, %v1596
        %v1598 = vand.u32 %v1597, 4294901760
        %1599 = vmatpush.msra.mxu0 %v1598
        %v1600 = vand.u32 %v312, 4294901760
        %v1601 = vsub.f32 %v312, %v1600
        %v1602 = vand.u32 %v1601, 4294901760
        %1603 = vmatpush.msra.mxu0 %v1602
        %v1604 = vand.u32 %v311, 4294901760
        %v1605 = vsub.f32 %v311, %v1604
        %v1606 = vand.u32 %v1605, 4294901760
        %1607 = vmatpush.msra.mxu0 %v1606
        %v1608 = vand.u32 %v310, 4294901760
        %v1609 = vsub.f32 %v310, %v1608
        %v1610 = vand.u32 %v1609, 4294901760
        %1611 = vmatpush.msra.mxu0 %v1610
        %v1612 = vand.u32 %v309, 4294901760
        %v1613 = vsub.f32 %v309, %v1612
        %v1614 = vand.u32 %v1613, 4294901760
        %1615 = vmatpush.msra.mxu0 %v1614
        %v1616 = vand.u32 %v308, 4294901760
        %v1617 = vsub.f32 %v308, %v1616
        %v1618 = vand.u32 %v1617, 4294901760
        %1619 = vmatpush.msra.mxu0 %v1618
        %v1620 = vand.u32 %v307, 4294901760
        %v1621 = vsub.f32 %v307, %v1620
        %v1622 = vand.u32 %v1621, 4294901760
        %1623 = vmatpush.msra.mxu0 %v1622
        %v1624 = vand.u32 %v306, 4294901760
        %v1625 = vsub.f32 %v306, %v1624
        %v1626 = vand.u32 %v1625, 4294901760
        %1627 = vmatpush.msra.mxu0 %v1626
        %v1628 = vand.u32 %v305, 4294901760
        %v1629 = vsub.f32 %v305, %v1628
        %v1630 = vand.u32 %v1629, 4294901760
        %1631 = vmatpush.msra.mxu0 %v1630
        %v1632 = vand.u32 %v304, 4294901760
        %v1633 = vsub.f32 %v304, %v1632
        %v1634 = vand.u32 %v1633, 4294901760
        %1635 = vmatpush.msra.mxu0 %v1634
        %v1636 = vand.u32 %v303, 4294901760
        %v1637 = vsub.f32 %v303, %v1636
        %v1638 = vand.u32 %v1637, 4294901760
        %1639 = vmatpush.msra.mxu0 %v1638
        %v1640 = vand.u32 %v302, 4294901760
        %v1641 = vsub.f32 %v302, %v1640
        %v1642 = vand.u32 %v1641, 4294901760
        %1643 = vmatpush.msra.mxu0 %v1642
        %v1644 = vand.u32 %v301, 4294901760
        %v1645 = vsub.f32 %v301, %v1644
        %v1646 = vand.u32 %v1645, 4294901760
        %1647 = vmatpush.msra.mxu0 %v1646
        %v1648 = vand.u32 %v300, 4294901760
        %v1649 = vsub.f32 %v300, %v1648
        %v1650 = vand.u32 %v1649, 4294901760
        %1651 = vmatpush.msra.mxu0 %v1650
        %v1652 = vand.u32 %v299, 4294901760
        %v1653 = vsub.f32 %v299, %v1652
        %v1654 = vand.u32 %v1653, 4294901760
        %1655 = vmatpush.msra.mxu0 %v1654
        %v1656 = vand.u32 %v249, 4294901760
        %1657 = vmatmul.f32.gmra.mxu0 %v1656
        %v1658 = vpop.f32.mrf.mxu0
        %v1659 = vadd.f32 %v1590, %v1658
        %1660 = vdwg.mxu0
        %v1661 = vand.u32 %v314, 4294901760
        %1662 = vmatpush.msra.mxu0 %v1661
        %v1663 = vand.u32 %v313, 4294901760
        %1664 = vmatpush.msra.mxu0 %v1663
        %v1665 = vand.u32 %v312, 4294901760
        %1666 = vmatpush.msra.mxu0 %v1665
        %v1667 = vand.u32 %v311, 4294901760
        %1668 = vmatpush.msra.mxu0 %v1667
        %v1669 = vand.u32 %v310, 4294901760
        %1670 = vmatpush.msra.mxu0 %v1669
        %v1671 = vand.u32 %v309, 4294901760
        %1672 = vmatpush.msra.mxu0 %v1671
        %v1673 = vand.u32 %v308, 4294901760
        %1674 = vmatpush.msra.mxu0 %v1673
        %v1675 = vand.u32 %v307, 4294901760
        %1676 = vmatpush.msra.mxu0 %v1675
        %v1677 = vand.u32 %v306, 4294901760
        %1678 = vmatpush.msra.mxu0 %v1677
        %v1679 = vand.u32 %v305, 4294901760
        %1680 = vmatpush.msra.mxu0 %v1679
        %v1681 = vand.u32 %v304, 4294901760
        %1682 = vmatpush.msra.mxu0 %v1681
        %v1683 = vand.u32 %v303, 4294901760
        %1684 = vmatpush.msra.mxu0 %v1683
        %v1685 = vand.u32 %v302, 4294901760
        %1686 = vmatpush.msra.mxu0 %v1685
        %v1687 = vand.u32 %v301, 4294901760
        %1688 = vmatpush.msra.mxu0 %v1687
        %v1689 = vand.u32 %v300, 4294901760
        %1690 = vmatpush.msra.mxu0 %v1689
        %v1691 = vand.u32 %v299, 4294901760
        %1692 = vmatpush.msra.mxu0 %v1691
        %v1693 = vand.u32 %v249, 4294901760
        %1694 = vmatmul.f32.gmra.mxu0 %v1693
        %v1695 = vpop.f32.mrf.mxu0
        %v1696 = vadd.f32 %v1659, %v1695
        %1697 = vdwg.mxu0
        %1698 = vmatpush.msra.mxu0 0.0
        %1699 = vmatpush.msra.mxu0 0.0
        %1700 = vmatpush.msra.mxu0 0.0
        %1701 = vmatpush.msra.mxu0 0.0
        %1702 = vmatpush.msra.mxu0 0.0
        %v1703 = vand.u32 %v325, 4294901760
        %1704 = vmatpush.msra.mxu0 %v1703
        %v1705 = vand.u32 %v324, 4294901760
        %1706 = vmatpush.msra.mxu0 %v1705
        %v1707 = vand.u32 %v323, 4294901760
        %1708 = vmatpush.msra.mxu0 %v1707
        %v1709 = vand.u32 %v322, 4294901760
        %1710 = vmatpush.msra.mxu0 %v1709
        %v1711 = vand.u32 %v321, 4294901760
        %1712 = vmatpush.msra.mxu0 %v1711
        %v1713 = vand.u32 %v320, 4294901760
        %1714 = vmatpush.msra.mxu0 %v1713
        %v1715 = vand.u32 %v319, 4294901760
        %1716 = vmatpush.msra.mxu0 %v1715
        %v1717 = vand.u32 %v318, 4294901760
        %1718 = vmatpush.msra.mxu0 %v1717
        %v1719 = vand.u32 %v317, 4294901760
        %1720 = vmatpush.msra.mxu0 %v1719
        %v1721 = vand.u32 %v316, 4294901760
        %1722 = vmatpush.msra.mxu0 %v1721
        %v1723 = vand.u32 %v315, 4294901760
        %1724 = vmatpush.msra.mxu0 %v1723
        %v1725 = vand.u32 %v332, 4294901760
        %v1726 = vsub.f32 %v332, %v1725
        %v1727 = vand.u32 %v1726, 4294901760
        %v1728 = vsub.f32 %v1726, %v1727
        %v1729 = vand.u32 %v1728, 4294901760
        %1730 = vmatmul.f32.gmra.mxu0 %v1729
        %v1731 = vpop.f32.mrf.mxu0
        %v1732 = vadd.f32 %v1696, %v1731
        %1733 = vdwg.mxu0
        %1734 = vmatpush.msra.mxu0 0.0
        %1735 = vmatpush.msra.mxu0 0.0
        %1736 = vmatpush.msra.mxu0 0.0
        %1737 = vmatpush.msra.mxu0 0.0
        %1738 = vmatpush.msra.mxu0 0.0
        %v1739 = vand.u32 %v325, 4294901760
        %v1740 = vsub.f32 %v325, %v1739
        %v1741 = vand.u32 %v1740, 4294901760
        %v1742 = vsub.f32 %v1740, %v1741
        %v1743 = vand.u32 %v1742, 4294901760
        %1744 = vmatpush.msra.mxu0 %v1743
        %v1745 = vand.u32 %v324, 4294901760
        %v1746 = vsub.f32 %v324, %v1745
        %v1747 = vand.u32 %v1746, 4294901760
        %v1748 = vsub.f32 %v1746, %v1747
        %v1749 = vand.u32 %v1748, 4294901760
        %1750 = vmatpush.msra.mxu0 %v1749
        %v1751 = vand.u32 %v323, 4294901760
        %v1752 = vsub.f32 %v323, %v1751
        %v1753 = vand.u32 %v1752, 4294901760
        %v1754 = vsub.f32 %v1752, %v1753
        %v1755 = vand.u32 %v1754, 4294901760
        %1756 = vmatpush.msra.mxu0 %v1755
        %v1757 = vand.u32 %v322, 4294901760
        %v1758 = vsub.f32 %v322, %v1757
        %v1759 = vand.u32 %v1758, 4294901760
        %v1760 = vsub.f32 %v1758, %v1759
        %v1761 = vand.u32 %v1760, 4294901760
        %1762 = vmatpush.msra.mxu0 %v1761
        %v1763 = vand.u32 %v321, 4294901760
        %v1764 = vsub.f32 %v321, %v1763
        %v1765 = vand.u32 %v1764, 4294901760
        %v1766 = vsub.f32 %v1764, %v1765
        %v1767 = vand.u32 %v1766, 4294901760
        %1768 = vmatpush.msra.mxu0 %v1767
        %v1769 = vand.u32 %v320, 4294901760
        %v1770 = vsub.f32 %v320, %v1769
        %v1771 = vand.u32 %v1770, 4294901760
        %v1772 = vsub.f32 %v1770, %v1771
        %v1773 = vand.u32 %v1772, 4294901760
        %1774 = vmatpush.msra.mxu0 %v1773
        %v1775 = vand.u32 %v319, 4294901760
        %v1776 = vsub.f32 %v319, %v1775
        %v1777 = vand.u32 %v1776, 4294901760
        %v1778 = vsub.f32 %v1776, %v1777
        %v1779 = vand.u32 %v1778, 4294901760
        %1780 = vmatpush.msra.mxu0 %v1779
        %v1781 = vand.u32 %v318, 4294901760
        %v1782 = vsub.f32 %v318, %v1781
        %v1783 = vand.u32 %v1782, 4294901760
        %v1784 = vsub.f32 %v1782, %v1783
        %v1785 = vand.u32 %v1784, 4294901760
        %1786 = vmatpush.msra.mxu0 %v1785
        %v1787 = vand.u32 %v317, 4294901760
        %v1788 = vsub.f32 %v317, %v1787
        %v1789 = vand.u32 %v1788, 4294901760
        %v1790 = vsub.f32 %v1788, %v1789
        %v1791 = vand.u32 %v1790, 4294901760
        %1792 = vmatpush.msra.mxu0 %v1791
        %v1793 = vand.u32 %v316, 4294901760
        %v1794 = vsub.f32 %v316, %v1793
        %v1795 = vand.u32 %v1794, 4294901760
        %v1796 = vsub.f32 %v1794, %v1795
        %v1797 = vand.u32 %v1796, 4294901760
        %1798 = vmatpush.msra.mxu0 %v1797
        %v1799 = vand.u32 %v315, 4294901760
        %v1800 = vsub.f32 %v315, %v1799
        %v1801 = vand.u32 %v1800, 4294901760
        %v1802 = vsub.f32 %v1800, %v1801
        %v1803 = vand.u32 %v1802, 4294901760
        %1804 = vmatpush.msra.mxu0 %v1803
        %v1805 = vand.u32 %v332, 4294901760
        %1806 = vmatmul.f32.gmra.mxu0 %v1805
        %v1807 = vpop.f32.mrf.mxu0
        %v1808 = vadd.f32 %v1732, %v1807
        %1809 = vdwg.mxu0
        %1810 = vmatpush.msra.mxu0 0.0
        %1811 = vmatpush.msra.mxu0 0.0
        %1812 = vmatpush.msra.mxu0 0.0
        %1813 = vmatpush.msra.mxu0 0.0
        %1814 = vmatpush.msra.mxu0 0.0
        %v1815 = vand.u32 %v325, 4294901760
        %v1816 = vsub.f32 %v325, %v1815
        %1817 = vmatpush.msra.mxu0 %v1816
        %v1818 = vand.u32 %v324, 4294901760
        %v1819 = vsub.f32 %v324, %v1818
        %1820 = vmatpush.msra.mxu0 %v1819
        %v1821 = vand.u32 %v323, 4294901760
        %v1822 = vsub.f32 %v323, %v1821
        %1823 = vmatpush.msra.mxu0 %v1822
        %v1824 = vand.u32 %v322, 4294901760
        %v1825 = vsub.f32 %v322, %v1824
        %1826 = vmatpush.msra.mxu0 %v1825
        %v1827 = vand.u32 %v321, 4294901760
        %v1828 = vsub.f32 %v321, %v1827
        %1829 = vmatpush.msra.mxu0 %v1828
        %v1830 = vand.u32 %v320, 4294901760
        %v1831 = vsub.f32 %v320, %v1830
        %1832 = vmatpush.msra.mxu0 %v1831
        %v1833 = vand.u32 %v319, 4294901760
        %v1834 = vsub.f32 %v319, %v1833
        %1835 = vmatpush.msra.mxu0 %v1834
        %v1836 = vand.u32 %v318, 4294901760
        %v1837 = vsub.f32 %v318, %v1836
        %1838 = vmatpush.msra.mxu0 %v1837
        %v1839 = vand.u32 %v317, 4294901760
        %v1840 = vsub.f32 %v317, %v1839
        %1841 = vmatpush.msra.mxu0 %v1840
        %v1842 = vand.u32 %v316, 4294901760
        %v1843 = vsub.f32 %v316, %v1842
        %1844 = vmatpush.msra.mxu0 %v1843
        %v1845 = vand.u32 %v315, 4294901760
        %v1846 = vsub.f32 %v315, %v1845
        %1847 = vmatpush.msra.mxu0 %v1846
        %v1848 = vand.u32 %v332, 4294901760
        %v1849 = vsub.f32 %v332, %v1848
        %1850 = vmatmul.f32.gmra.mxu0 %v1849
        %v1851 = vpop.f32.mrf.mxu0
        %v1852 = vadd.f32 %v1808, %v1851
        %1853 = vdwg.mxu0
        %1854 = vmatpush.msra.mxu0 0.0
        %1855 = vmatpush.msra.mxu0 0.0
        %1856 = vmatpush.msra.mxu0 0.0
        %1857 = vmatpush.msra.mxu0 0.0
        %1858 = vmatpush.msra.mxu0 0.0
        %v1859 = vand.u32 %v325, 4294901760
        %1860 = vmatpush.msra.mxu0 %v1859
        %v1861 = vand.u32 %v324, 4294901760
        %1862 = vmatpush.msra.mxu0 %v1861
        %v1863 = vand.u32 %v323, 4294901760
        %1864 = vmatpush.msra.mxu0 %v1863
        %v1865 = vand.u32 %v322, 4294901760
        %1866 = vmatpush.msra.mxu0 %v1865
        %v1867 = vand.u32 %v321, 4294901760
        %1868 = vmatpush.msra.mxu0 %v1867
        %v1869 = vand.u32 %v320, 4294901760
        %1870 = vmatpush.msra.mxu0 %v1869
        %v1871 = vand.u32 %v319, 4294901760
        %1872 = vmatpush.msra.mxu0 %v1871
        %v1873 = vand.u32 %v318, 4294901760
        %1874 = vmatpush.msra.mxu0 %v1873
        %v1875 = vand.u32 %v317, 4294901760
        %1876 = vmatpush.msra.mxu0 %v1875
        %v1877 = vand.u32 %v316, 4294901760
        %1878 = vmatpush.msra.mxu0 %v1877
        %v1879 = vand.u32 %v315, 4294901760
        %1880 = vmatpush.msra.mxu0 %v1879
        %v1881 = vand.u32 %v332, 4294901760
        %v1882 = vsub.f32 %v332, %v1881
        %v1883 = vand.u32 %v1882, 4294901760
        %1884 = vmatmul.f32.gmra.mxu0 %v1883
        %v1885 = vpop.f32.mrf.mxu0
        %v1886 = vadd.f32 %v1852, %v1885
        %1887 = vdwg.mxu0
        %1888 = vmatpush.msra.mxu0 0.0
        %1889 = vmatpush.msra.mxu0 0.0
        %1890 = vmatpush.msra.mxu0 0.0
        %1891 = vmatpush.msra.mxu0 0.0
        %1892 = vmatpush.msra.mxu0 0.0
        %v1893 = vand.u32 %v325, 4294901760
        %v1894 = vsub.f32 %v325, %v1893
        %v1895 = vand.u32 %v1894, 4294901760
        %1896 = vmatpush.msra.mxu0 %v1895
        %v1897 = vand.u32 %v324, 4294901760
        %v1898 = vsub.f32 %v324, %v1897
        %v1899 = vand.u32 %v1898, 4294901760
        %1900 = vmatpush.msra.mxu0 %v1899
        %v1901 = vand.u32 %v323, 4294901760
        %v1902 = vsub.f32 %v323, %v1901
        %v1903 = vand.u32 %v1902, 4294901760
        %1904 = vmatpush.msra.mxu0 %v1903
        %v1905 = vand.u32 %v322, 4294901760
        %v1906 = vsub.f32 %v322, %v1905
        %v1907 = vand.u32 %v1906, 4294901760
        %1908 = vmatpush.msra.mxu0 %v1907
        %v1909 = vand.u32 %v321, 4294901760
        %v1910 = vsub.f32 %v321, %v1909
        %v1911 = vand.u32 %v1910, 4294901760
        %1912 = vmatpush.msra.mxu0 %v1911
        %v1913 = vand.u32 %v320, 4294901760
        %v1914 = vsub.f32 %v320, %v1913
        %v1915 = vand.u32 %v1914, 4294901760
        %1916 = vmatpush.msra.mxu0 %v1915
        %v1917 = vand.u32 %v319, 4294901760
        %v1918 = vsub.f32 %v319, %v1917
        %v1919 = vand.u32 %v1918, 4294901760
        %1920 = vmatpush.msra.mxu0 %v1919
        %v1921 = vand.u32 %v318, 4294901760
        %v1922 = vsub.f32 %v318, %v1921
        %v1923 = vand.u32 %v1922, 4294901760
        %1924 = vmatpush.msra.mxu0 %v1923
        %v1925 = vand.u32 %v317, 4294901760
        %v1926 = vsub.f32 %v317, %v1925
        %v1927 = vand.u32 %v1926, 4294901760
        %1928 = vmatpush.msra.mxu0 %v1927
        %v1929 = vand.u32 %v316, 4294901760
        %v1930 = vsub.f32 %v316, %v1929
        %v1931 = vand.u32 %v1930, 4294901760
        %1932 = vmatpush.msra.mxu0 %v1931
        %v1933 = vand.u32 %v315, 4294901760
        %v1934 = vsub.f32 %v315, %v1933
        %v1935 = vand.u32 %v1934, 4294901760
        %1936 = vmatpush.msra.mxu0 %v1935
        %v1937 = vand.u32 %v332, 4294901760
        %1938 = vmatmul.f32.gmra.mxu0 %v1937
        %v1939 = vpop.f32.mrf.mxu0
        %v1940 = vadd.f32 %v1886, %v1939
        %1941 = vdwg.mxu0
        %1942 = vmatpush.msra.mxu0 0.0
        %1943 = vmatpush.msra.mxu0 0.0
        %1944 = vmatpush.msra.mxu0 0.0
        %1945 = vmatpush.msra.mxu0 0.0
        %1946 = vmatpush.msra.mxu0 0.0
        %v1947 = vand.u32 %v325, 4294901760
        %1948 = vmatpush.msra.mxu0 %v1947
        %v1949 = vand.u32 %v324, 4294901760
        %1950 = vmatpush.msra.mxu0 %v1949
        %v1951 = vand.u32 %v323, 4294901760
        %1952 = vmatpush.msra.mxu0 %v1951
        %v1953 = vand.u32 %v322, 4294901760
        %1954 = vmatpush.msra.mxu0 %v1953
        %v1955 = vand.u32 %v321, 4294901760
        %1956 = vmatpush.msra.mxu0 %v1955
        %v1957 = vand.u32 %v320, 4294901760
        %1958 = vmatpush.msra.mxu0 %v1957
        %v1959 = vand.u32 %v319, 4294901760
        %1960 = vmatpush.msra.mxu0 %v1959
        %v1961 = vand.u32 %v318, 4294901760
        %1962 = vmatpush.msra.mxu0 %v1961
        %v1963 = vand.u32 %v317, 4294901760
        %1964 = vmatpush.msra.mxu0 %v1963
        %v1965 = vand.u32 %v316, 4294901760
        %1966 = vmatpush.msra.mxu0 %v1965
        %v1967 = vand.u32 %v315, 4294901760
        %1968 = vmatpush.msra.mxu0 %v1967
        %v1969 = vand.u32 %v332, 4294901760
        %1970 = vmatmul.f32.gmra.mxu0 %v1969
        %v1971 = vpop.f32.mrf.mxu0
        %v1972 = vadd.f32 %v1940, %v1971
        %1973 = vdwg.mxu0
        %v1974 = vmax.f32 %v1972, 0.0
        %1975 = vst [vmem:[%s245] sm:$0xff] %v1974
        %p1976 = scmp.lt.s32.totalorder %s21, 0
        %s1977 = scalar_select %p1976, %s21, 0
        %p1978 = scmp.lt.s32.totalorder %s22, 1
        %s1979 = scalar_select %p1978, %s22, 1
        %s1980 = smul.addr %s1977, 2
        %s1981 = sadd.s32 %s1979, %s1980
        %s1982 = smul.addr %s1981, 8
        %s1983 = scalar_lea.vmem %s3, %s1982
        // Predicated region
        $region37: #{linear_relu.1} parent=31 // pred_check
          %p1984 = pneg %p127
        $region38: #{linear_relu.1} parent=31 // pred_check_branch
          %1986 = sbr.rel (%p1984) target = $region40
        $region39: #{linear_relu.1} parent=31 // pred_region
          _
        $region40: #{linear_relu.1} parent=31 // pred_fallthru
          _
      $region32: #{linear_relu.1} parent=5 // pred_fallthru
        _
      %p1987 = scmp.le.s32.totalorder 2, %s12
      // Predicated region
      $region41: #{linear_relu.1} parent=5 // pred_check
        %p1988 = pneg %p1987
      $region42: #{linear_relu.1} parent=5 // pred_check_branch
        %1990 = sbr.rel (%p1988) target = $region44
      $region43: #{linear_relu.1} parent=5 // pred_region
        %s1991 = ssub.s32 %s12, 2
        // Predicated region
        $region45: #{linear_relu.1} parent=43 // pred_check
          %p1992 = pneg %p133
        $region46: #{linear_relu.1} parent=43 // pred_check_branch
          %1994 = sbr.rel (%p1992) target = $region48
        $region47: #{linear_relu.1} parent=43 // pred_region
          %p1995 = scmp.lt.s32.totalorder %s23, 0
          %s1996 = scalar_select %p1995, %s23, 0
          %p1997 = scmp.lt.s32.totalorder %s24, 1
          %s1998 = scalar_select %p1997, %s24, 1
          %s1999 = smul.addr %s1996, 2
          %s2000 = sadd.s32 %s1998, %s1999
          %s2001 = smul.addr %s2000, 8
          %s2002 = scalar_lea.vmem %s3, %s2001
        $region48: #{linear_relu.1} parent=43 // pred_fallthru
          _
      $region44: #{linear_relu.1} parent=5 // pred_fallthru
        _
    $region6: #{linear_relu.1} parent=1 // loop_footer
      %s16 = sadd.s32 1, %s12
    $region7: #{linear_relu.1} parent=1 // loop_footer_branch
      %11 = sbr.rel target = $region3
    $region8: #{linear_relu.1} parent=1 // loop_exit
      _
    %2003 = vsyncpa [#allocation3], 1
    %s2004 = scalar_lea.sflag [#allocation3], 1
    %2005 = vsyncpa %s2004, 1

</llo_original>
